<compile_context>
chip_gen: v5e
topology: v5e:2x2
jax: 0.10.0
libtpu: 0.0.40
codegen_flags: <defaults>
</compile_context>

<pallas_src>
import jax
import jax.numpy as jnp
from jax.experimental import pallas as pl
from jax.experimental.pallas import tpu as pltpu


# ----------------------------------------------------------------------------
# Fused kernel: per-block input projection + sequential LSTM recurrence
# ----------------------------------------------------------------------------
def _lstm_fused_kernel(x_ref, wih_ref, whh_ref, b_ref, out_ref,
                       h_scr, c_scr, gx_scr):
    """x_ref  : (Tb, Bp, Dp)   bf16  input block for Tb time steps
       wih_ref: (Dp, 4*Hp)     bf16  resident input->gates weights
       whh_ref: (Hp, 4*Hp)     bf16  resident hidden->gates weights
       b_ref  : (1, 4*Hp)      f32   resident bias
       out_ref: (Tb, Bp, Hp)   f32   hidden states for this block
       h_scr  : (Bp, Hp)       f32   carried hidden state
       c_scr  : (Bp, Hp)       f32   carried cell state
       gx_scr : (Tb, Bp, 4*Hp) f32   per-block precomputed x@W_ih + b
    """
    blk = pl.program_id(0)

    @pl.when(blk == 0)
    def _():
        h_scr[...] = jnp.zeros_like(h_scr)
        c_scr[...] = jnp.zeros_like(c_scr)

    Tb, Bp, Dp = x_ref.shape
    Hp = h_scr.shape[1]
    G = 4 * Hp

    # Block-level input projection: one large MXU-friendly matmul covering all
    # Tb steps of this block (its DMA/compute is pipelined across blocks).
    x_flat = x_ref[...].reshape(Tb * Bp, Dp)
    gx_scr[...] = (
        jnp.dot(x_flat, wih_ref[...], preferred_element_type=jnp.float32)
        + b_ref[...]
    ).reshape(Tb, Bp, G)

    w_hh = whh_ref[...]                      # hoisted, resident in VMEM (bf16)

    def step(i, carry):
        h, c = carry                         # f32 (Bp, Hp)
        gates = gx_scr[i] + jnp.dot(
            h.astype(w_hh.dtype), w_hh, preferred_element_type=jnp.float32
        )                                    # (Bp, 4*Hp) f32
        # Lane-aligned gate slices (Hp is a multiple of 128).
        i_g = jax.nn.sigmoid(gates[:, 0 * Hp:1 * Hp])
        f_g = jax.nn.sigmoid(gates[:, 1 * Hp:2 * Hp])
        g_g = jnp.tanh(gates[:, 2 * Hp:3 * Hp])
        o_g = jax.nn.sigmoid(gates[:, 3 * Hp:4 * Hp])
        c_new = f_g * c + i_g * g_g
        h_new = o_g * jnp.tanh(c_new)
        out_ref[i] = h_new.astype(out_ref.dtype)
        return h_new, c_new

    h_f, c_f = jax.lax.fori_loop(
        0, Tb, step, (h_scr[...], c_scr[...]), unroll=True
    )
    h_scr[...] = h_f
    c_scr[...] = c_f


# ----------------------------------------------------------------------------
# Wrapper
# ----------------------------------------------------------------------------
def _round_up(x, m):
    return ((x + m - 1) // m) * m


def lstm_forward(x, w_ih, w_hh, b, *, time_block=8, matmul_dtype=jnp.bfloat16):
    """x: [T, B, D] f32; w_ih: [D, 4H]; w_hh: [H, 4H]; b: [1, 4H].

    Returns hidden states for every step: [T, B, H] f32.
    """
    T, B, D = x.shape
    H = w_hh.shape[0]
    assert w_ih.shape == (D, 4 * H) and b.shape == (1, 4 * H)

    # --- pad to TPU-friendly shapes (padding is numerically exact: padded
    #     columns/rows contribute exact zeros and padded hidden units stay 0).
    Tb = time_block
    Tp = _round_up(T, Tb)
    Bp = _round_up(B, 8)
    Dp = _round_up(D, 128)
    Hp = _round_up(H, 128)
    G = 4 * Hp

    x_p = jnp.pad(x, ((0, Tp - T), (0, Bp - B), (0, Dp - D))).astype(matmul_dtype)

    # Per-gate padding so the i/f/g/o slices land on lane-tile boundaries.
    w_ih_p = jnp.pad(w_ih.reshape(D, 4, H), ((0, Dp - D), (0, 0), (0, Hp - H)))
    w_ih_p = w_ih_p.reshape(Dp, G).astype(matmul_dtype)
    w_hh_p = jnp.pad(w_hh.reshape(H, 4, H), ((0, Hp - H), (0, 0), (0, Hp - H)))
    w_hh_p = w_hh_p.reshape(Hp, G).astype(matmul_dtype)
    b_p = jnp.pad(b.reshape(1, 4, H), ((0, 0), (0, 0), (0, Hp - H)))
    b_p = b_p.reshape(1, G).astype(jnp.float32)

    n_blocks = Tp // Tb

    out_p = pl.pallas_call(
        _lstm_fused_kernel,
        out_shape=jax.ShapeDtypeStruct((Tp, Bp, Hp), jnp.float32),
        grid_spec=pltpu.PrefetchScalarGridSpec(
            num_scalar_prefetch=0,
            grid=(n_blocks,),
            in_specs=[
                pl.BlockSpec((Tb, Bp, Dp), lambda t: (t, 0, 0)),   # x block
                pl.BlockSpec((Dp, G), lambda t: (0, 0)),           # resident W_ih
                pl.BlockSpec((Hp, G), lambda t: (0, 0)),           # resident W_hh
                pl.BlockSpec((1, G), lambda t: (0, 0)),            # resident bias
            ],
            out_specs=pl.BlockSpec((Tb, Bp, Hp), lambda t: (t, 0, 0)),
            scratch_shapes=[
                pltpu.VMEM((Bp, Hp), jnp.float32),    # h carry (f32)
                pltpu.VMEM((Bp, Hp), jnp.float32),    # c carry (f32)
                pltpu.VMEM((Tb, Bp, G), jnp.float32), # per-block gates_x
            ],
        ),
        compiler_params=pltpu.CompilerParams(
            # Time recurrence: must stay sequential.
            dimension_semantics=("arbitrary",),
            vmem_limit_bytes=32 * 1024 * 1024,
        ),
        cost_estimate=pl.CostEstimate(
            flops=2 * Tp * Bp * Dp * G + 2 * Tp * Bp * Hp * G,
            transcendentals=5 * Tp * Bp * Hp,
            bytes_accessed=(2 * Tp * Bp * Dp          # x (bf16)
                            + 4 * Tp * Bp * Hp        # out (f32)
                            + 2 * (Dp + Hp) * G       # weights (bf16)
                            + 4 * G),                 # bias (f32)
        ),
    )(x_p, w_ih_p, w_hh_p, b_p)

    return out_p[:T, :B, :H]


# ----------------------------------------------------------------------------
# Pure-JAX reference (same bf16 matmul inputs / f32 accumulation & gate math)
# ----------------------------------------------------------------------------
def lstm_reference(x, w_ih, w_hh, b, matmul_dtype=jnp.bfloat16):
    T, B, D = x.shape
    H = w_hh.shape[0]
    x_c = x.astype(matmul_dtype)
    w_ih_c = w_ih.astype(matmul_dtype)
    w_hh_c = w_hh.astype(matmul_dtype)

    gates_x = jnp.einsum(
        "tbd,dg->tbg", x_c, w_ih_c, preferred_element_type=jnp.float32
    ) + b

    def step(carry, gx_t):
        h, c = carry
        gates = gx_t + jnp.dot(
            h.astype(matmul_dtype), w_hh_c, preferred_element_type=jnp.float32
        )
        i_g = jax.nn.sigmoid(gates[:, 0 * H:1 * H])
        f_g = jax.nn.sigmoid(gates[:, 1 * H:2 * H])
        g_g = jnp.tanh(gates[:, 2 * H:3 * H])
        o_g = jax.nn.sigmoid(gates[:, 3 * H:4 * H])
        c_new = f_g * c + i_g * g_g
        h_new = o_g * jnp.tanh(c_new)
        return (h_new, c_new), h_new

    init = (jnp.zeros((B, H), jnp.float32), jnp.zeros((B, H), jnp.float32))
    _, hs = jax.lax.scan(step, init, gates_x)
    return hs


if __name__ == "__main__":
    # Small shapes consistent with an LSTM-over-BERT-hidden-states model.
    # (T, B, D deliberately not tile-multiples to exercise the padding path;
    #  H lane-dense as recommended.)
    T, B, D, H = 16, 4, 64, 128

    key = jax.random.PRNGKey(0)
    kx, k1, k2, k3 = jax.random.split(key, 4)

    x = jax.random.normal(kx, (T, B, D), dtype=jnp.float32)
    scale = 1.0 / jnp.sqrt(jnp.float32(H))
    w_ih = jax.random.uniform(k1, (D, 4 * H), jnp.float32, -scale, scale)
    w_hh = jax.random.uniform(k2, (H, 4 * H), jnp.float32, -scale, scale)
    b = jax.random.uniform(k3, (1, 4 * H), jnp.float32, -scale, scale)

    out = jax.block_until_ready(lstm_forward(x, w_ih, w_hh, b))

    ref = lstm_reference(x, w_ih, w_hh, b)
    assert out.shape == (T, B, H)
    assert jnp.allclose(out, ref, atol=1e-3, rtol=1e-3), "mismatch vs reference"

    print("KERNEL_OK")
</pallas_src>

<mosaic_0001>
module attributes {stable_mosaic.version = 11 : i64} {
  func.func @_lstm_fused_kernel(%arg0: i32, %arg1: memref<8x8x128xbf16, #tpu.memory_space<vmem>>, %arg2: memref<128x512xbf16, #tpu.memory_space<vmem>>, %arg3: memref<128x512xbf16, #tpu.memory_space<vmem>>, %arg4: memref<1x512xf32, #tpu.memory_space<vmem>>, %arg5: memref<8x8x128xf32, #tpu.memory_space<vmem>>, %arg6: memref<8x128xf32, #tpu.memory_space<vmem>>, %arg7: memref<8x128xf32, #tpu.memory_space<vmem>>, %arg8: memref<8x8x512xf32, #tpu.memory_space<vmem>>) attributes {dimension_semantics = [#tpu.dimension_semantics<arbitrary>], iteration_bounds = array<i64: 2>, scalar_prefetch = 0 : i64, scratch_operands = 3 : i64, tpu.core_type = #tpu.core_type<tc>, window_params = [{transform_indices = @transform_0, window_bounds = array<i64: 8, 8, 128>}, {pipeline_mode = #tpu.pipeline_mode<synchronous>, transform_indices = @transform_1, window_bounds = array<i64: 128, 512>}, {pipeline_mode = #tpu.pipeline_mode<synchronous>, transform_indices = @transform_2, window_bounds = array<i64: 128, 512>}, {pipeline_mode = #tpu.pipeline_mode<synchronous>, transform_indices = @transform_3, window_bounds = array<i64: 1, 512>}, {transform_indices = @transform_4, window_bounds = array<i64: 8, 8, 128>}]} {
    %c0_i32 = arith.constant 0 : i32
    %0 = arith.cmpi eq, %arg0, %c0_i32 : i32
    %1 = arith.extui %0 : i1 to i32
    %c0_i32_0 = arith.constant 0 : i32
    %2 = arith.cmpi ne, %1, %c0_i32_0 : i32
    scf.if %2 {
      %cst_85 = arith.constant 0.000000e+00 : f32
      %297 = vector.broadcast %cst_85 : f32 to vector<8x128xf32>
      %c0_86 = arith.constant 0 : index
      %c0_87 = arith.constant 0 : index
      %298 = vector.load %arg6[%c0_86, %c0_87] : memref<8x128xf32, #tpu.memory_space<vmem>>, vector<8x128xf32>
      tpu.vector_store %arg6[%c0_86, %c0_87], %297 {strides = array<i32>} : memref<8x128xf32, #tpu.memory_space<vmem>>, vector<8x128xf32>,
      %cst_88 = arith.constant 0.000000e+00 : f32
      %299 = vector.broadcast %cst_88 : f32 to vector<8x128xf32>
      %c0_89 = arith.constant 0 : index
      %c0_90 = arith.constant 0 : index
      %300 = vector.load %arg7[%c0_89, %c0_90] : memref<8x128xf32, #tpu.memory_space<vmem>>, vector<8x128xf32>
      tpu.vector_store %arg7[%c0_89, %c0_90], %299 {strides = array<i32>} : memref<8x128xf32, #tpu.memory_space<vmem>>, vector<8x128xf32>,
    } else {
    }
    %c0 = arith.constant 0 : index
    %c0_1 = arith.constant 0 : index
    %c0_2 = arith.constant 0 : index
    %3 = vector.load %arg1[%c0, %c0_1, %c0_2] : memref<8x8x128xbf16, #tpu.memory_space<vmem>>, vector<8x8x128xbf16>
    %4 = vector.shape_cast %3 : vector<8x8x128xbf16> to vector<64x128xbf16>
    %c0_3 = arith.constant 0 : index
    %c0_4 = arith.constant 0 : index
    %5 = vector.load %arg2[%c0_3, %c0_4] : memref<128x512xbf16, #tpu.memory_space<vmem>>, vector<128x512xbf16>
    %cst = arith.constant dense<0.000000e+00> : vector<64x512xf32>
    %6 = tpu.matmul %4, %5, %cst {dimension_numbers = #tpu.dot_dimension_numbers<[1], [0], [0], [1], [0, 0, 1, 1], [], []>} : vector<64x128xbf16>, vector<128x512xbf16>, vector<64x512xf32> -> vector<64x512xf32>
    %c0_5 = arith.constant 0 : index
    %c0_6 = arith.constant 0 : index
    %7 = vector.load %arg4[%c0_5, %c0_6] : memref<1x512xf32, #tpu.memory_space<vmem>>, vector<1x512xf32>
    %8 = vector.broadcast %7 : vector<1x512xf32> to vector<64x512xf32>
    %9 = arith.addf %6, %8 : vector<64x512xf32>
    %10 = vector.shape_cast %9 : vector<64x512xf32> to vector<8x8x512xf32>
    %c0_7 = arith.constant 0 : index
    %c0_8 = arith.constant 0 : index
    %c0_9 = arith.constant 0 : index
    %11 = vector.load %arg8[%c0_7, %c0_8, %c0_9] : memref<8x8x512xf32, #tpu.memory_space<vmem>>, vector<8x8x512xf32>
    tpu.vector_store %arg8[%c0_7, %c0_8, %c0_9], %10 {strides = array<i32>} : memref<8x8x512xf32, #tpu.memory_space<vmem>>, vector<8x8x512xf32>,
    %c0_10 = arith.constant 0 : index
    %c0_11 = arith.constant 0 : index
    %12 = vector.load %arg3[%c0_10, %c0_11] : memref<128x512xbf16, #tpu.memory_space<vmem>>, vector<128x512xbf16>
    %c0_12 = arith.constant 0 : index
    %c0_13 = arith.constant 0 : index
    %13 = vector.load %arg6[%c0_12, %c0_13] : memref<8x128xf32, #tpu.memory_space<vmem>>, vector<8x128xf32>
    %c0_14 = arith.constant 0 : index
    %c0_15 = arith.constant 0 : index
    %14 = vector.load %arg7[%c0_14, %c0_15] : memref<8x128xf32, #tpu.memory_space<vmem>>, vector<8x128xf32>
    %c0_i32_16 = arith.constant 0 : i32
    %15 = arith.index_cast %c0_i32_16 : i32 to index
    %c0_17 = arith.constant 0 : index
    %c0_18 = arith.constant 0 : index
    %16 = vector.load %arg8[%15, %c0_17, %c0_18] : memref<8x8x512xf32, #tpu.memory_space<vmem>>, vector<1x8x512xf32>
    %17 = vector.shape_cast %16 : vector<1x8x512xf32> to vector<8x512xf32>
    %18 = arith.truncf %13 : vector<8x128xf32> to vector<8x128xbf16>
    %cst_19 = arith.constant dense<0.000000e+00> : vector<8x512xf32>
    %19 = tpu.matmul %18, %12, %cst_19 {dimension_numbers = #tpu.dot_dimension_numbers<[1], [0], [0], [1], [0, 0, 1, 1], [], []>} : vector<8x128xbf16>, vector<128x512xbf16>, vector<8x512xf32> -> vector<8x512xf32>
    %20 = arith.addf %17, %19 : vector<8x512xf32>
    %21 = vector.extract_strided_slice %20 {offsets = [0, 0], sizes = [8, 128], strides = [1, 1]} : vector<8x512xf32> to vector<8x128xf32>
    %22 = arith.negf %21 : vector<8x128xf32>
    %23 = math.exp %22 : vector<8x128xf32>
    %cst_20 = arith.constant 1.000000e+00 : f32
    %24 = vector.broadcast %cst_20 : f32 to vector<8x128xf32>
    %25 = arith.addf %24, %23 : vector<8x128xf32>
    %26 = arith.divf %24, %25 : vector<8x128xf32>
    %27 = vector.extract_strided_slice %20 {offsets = [0, 128], sizes = [8, 128], strides = [1, 1]} : vector<8x512xf32> to vector<8x128xf32>
    %28 = arith.negf %27 : vector<8x128xf32>
    %29 = math.exp %28 : vector<8x128xf32>
    %cst_21 = arith.constant 1.000000e+00 : f32
    %30 = vector.broadcast %cst_21 : f32 to vector<8x128xf32>
    %31 = arith.addf %30, %29 : vector<8x128xf32>
    %32 = arith.divf %30, %31 : vector<8x128xf32>
    %33 = vector.extract_strided_slice %20 {offsets = [0, 256], sizes = [8, 128], strides = [1, 1]} : vector<8x512xf32> to vector<8x128xf32>
    %34 = math.tanh %33 : vector<8x128xf32>
    %35 = vector.extract_strided_slice %20 {offsets = [0, 384], sizes = [8, 128], strides = [1, 1]} : vector<8x512xf32> to vector<8x128xf32>
    %36 = arith.negf %35 : vector<8x128xf32>
    %37 = math.exp %36 : vector<8x128xf32>
    %cst_22 = arith.constant 1.000000e+00 : f32
    %38 = vector.broadcast %cst_22 : f32 to vector<8x128xf32>
    %39 = arith.addf %38, %37 : vector<8x128xf32>
    %40 = arith.divf %38, %39 : vector<8x128xf32>
    %41 = arith.mulf %32, %14 : vector<8x128xf32>
    %42 = arith.mulf %26, %34 : vector<8x128xf32>
    %43 = arith.addf %41, %42 : vector<8x128xf32>
    %44 = math.tanh %43 : vector<8x128xf32>
    %45 = arith.mulf %40, %44 : vector<8x128xf32>
    %46 = arith.index_cast %c0_i32_16 : i32 to index
    %c0_23 = arith.constant 0 : index
    %c0_24 = arith.constant 0 : index
    %47 = vector.load %arg5[%46, %c0_23, %c0_24] : memref<8x8x128xf32, #tpu.memory_space<vmem>>, vector<1x8x128xf32>
    %48 = vector.shape_cast %47 : vector<1x8x128xf32> to vector<8x128xf32>
    %49 = vector.shape_cast %45 : vector<8x128xf32> to vector<1x8x128xf32>
    tpu.vector_store %arg5[%46, %c0_23, %c0_24], %49 {strides = array<i32>} : memref<8x8x128xf32, #tpu.memory_space<vmem>>, vector<1x8x128xf32>,
    %c1_i32 = arith.constant 1 : i32
    %50 = arith.index_cast %c1_i32 : i32 to index
    %c0_25 = arith.constant 0 : index
    %c0_26 = arith.constant 0 : index
    %51 = vector.load %arg8[%50, %c0_25, %c0_26] : memref<8x8x512xf32, #tpu.memory_space<vmem>>, vector<1x8x512xf32>
    %52 = vector.shape_cast %51 : vector<1x8x512xf32> to vector<8x512xf32>
    %53 = arith.truncf %45 : vector<8x128xf32> to vector<8x128xbf16>
    %cst_27 = arith.constant dense<0.000000e+00> : vector<8x512xf32>
    %54 = tpu.matmul %53, %12, %cst_27 {dimension_numbers = #tpu.dot_dimension_numbers<[1], [0], [0], [1], [0, 0, 1, 1], [], []>} : vector<8x128xbf16>, vector<128x512xbf16>, vector<8x512xf32> -> vector<8x512xf32>
    %55 = arith.addf %52, %54 : vector<8x512xf32>
    %56 = vector.extract_strided_slice %55 {offsets = [0, 0], sizes = [8, 128], strides = [1, 1]} : vector<8x512xf32> to vector<8x128xf32>
    %57 = arith.negf %56 : vector<8x128xf32>
    %58 = math.exp %57 : vector<8x128xf32>
    %cst_28 = arith.constant 1.000000e+00 : f32
    %59 = vector.broadcast %cst_28 : f32 to vector<8x128xf32>
    %60 = arith.addf %59, %58 : vector<8x128xf32>
    %61 = arith.divf %59, %60 : vector<8x128xf32>
    %62 = vector.extract_strided_slice %55 {offsets = [0, 128], sizes = [8, 128], strides = [1, 1]} : vector<8x512xf32> to vector<8x128xf32>
    %63 = arith.negf %62 : vector<8x128xf32>
    %64 = math.exp %63 : vector<8x128xf32>
    %cst_29 = arith.constant 1.000000e+00 : f32
    %65 = vector.broadcast %cst_29 : f32 to vector<8x128xf32>
    %66 = arith.addf %65, %64 : vector<8x128xf32>
    %67 = arith.divf %65, %66 : vector<8x128xf32>
    %68 = vector.extract_strided_slice %55 {offsets = [0, 256], sizes = [8, 128], strides = [1, 1]} : vector<8x512xf32> to vector<8x128xf32>
    %69 = math.tanh %68 : vector<8x128xf32>
    %70 = vector.extract_strided_slice %55 {offsets = [0, 384], sizes = [8, 128], strides = [1, 1]} : vector<8x512xf32> to vector<8x128xf32>
    %71 = arith.negf %70 : vector<8x128xf32>
    %72 = math.exp %71 : vector<8x128xf32>
    %cst_30 = arith.constant 1.000000e+00 : f32
    %73 = vector.broadcast %cst_30 : f32 to vector<8x128xf32>
    %74 = arith.addf %73, %72 : vector<8x128xf32>
    %75 = arith.divf %73, %74 : vector<8x128xf32>
    %76 = arith.mulf %67, %43 : vector<8x128xf32>
    %77 = arith.mulf %61, %69 : vector<8x128xf32>
    %78 = arith.addf %76, %77 : vector<8x128xf32>
    %79 = math.tanh %78 : vector<8x128xf32>
    %80 = arith.mulf %75, %79 : vector<8x128xf32>
    %81 = arith.index_cast %c1_i32 : i32 to index
    %c0_31 = arith.constant 0 : index
    %c0_32 = arith.constant 0 : index
    %82 = vector.load %arg5[%81, %c0_31, %c0_32] : memref<8x8x128xf32, #tpu.memory_space<vmem>>, vector<1x8x128xf32>
    %83 = vector.shape_cast %82 : vector<1x8x128xf32> to vector<8x128xf32>
    %84 = vector.shape_cast %80 : vector<8x128xf32> to vector<1x8x128xf32>
    tpu.vector_store %arg5[%81, %c0_31, %c0_32], %84 {strides = array<i32>} : memref<8x8x128xf32, #tpu.memory_space<vmem>>, vector<1x8x128xf32>,
    %c2_i32 = arith.constant 2 : i32
    %85 = arith.index_cast %c2_i32 : i32 to index
    %c0_33 = arith.constant 0 : index
    %c0_34 = arith.constant 0 : index
    %86 = vector.load %arg8[%85, %c0_33, %c0_34] : memref<8x8x512xf32, #tpu.memory_space<vmem>>, vector<1x8x512xf32>
    %87 = vector.shape_cast %86 : vector<1x8x512xf32> to vector<8x512xf32>
    %88 = arith.truncf %80 : vector<8x128xf32> to vector<8x128xbf16>
    %cst_35 = arith.constant dense<0.000000e+00> : vector<8x512xf32>
    %89 = tpu.matmul %88, %12, %cst_35 {dimension_numbers = #tpu.dot_dimension_numbers<[1], [0], [0], [1], [0, 0, 1, 1], [], []>} : vector<8x128xbf16>, vector<128x512xbf16>, vector<8x512xf32> -> vector<8x512xf32>
    %90 = arith.addf %87, %89 : vector<8x512xf32>
    %91 = vector.extract_strided_slice %90 {offsets = [0, 0], sizes = [8, 128], strides = [1, 1]} : vector<8x512xf32> to vector<8x128xf32>
    %92 = arith.negf %91 : vector<8x128xf32>
    %93 = math.exp %92 : vector<8x128xf32>
    %cst_36 = arith.constant 1.000000e+00 : f32
    %94 = vector.broadcast %cst_36 : f32 to vector<8x128xf32>
    %95 = arith.addf %94, %93 : vector<8x128xf32>
    %96 = arith.divf %94, %95 : vector<8x128xf32>
    %97 = vector.extract_strided_slice %90 {offsets = [0, 128], sizes = [8, 128], strides = [1, 1]} : vector<8x512xf32> to vector<8x128xf32>
    %98 = arith.negf %97 : vector<8x128xf32>
    %99 = math.exp %98 : vector<8x128xf32>
    %cst_37 = arith.constant 1.000000e+00 : f32
    %100 = vector.broadcast %cst_37 : f32 to vector<8x128xf32>
    %101 = arith.addf %100, %99 : vector<8x128xf32>
    %102 = arith.divf %100, %101 : vector<8x128xf32>
    %103 = vector.extract_strided_slice %90 {offsets = [0, 256], sizes = [8, 128], strides = [1, 1]} : vector<8x512xf32> to vector<8x128xf32>
    %104 = math.tanh %103 : vector<8x128xf32>
    %105 = vector.extract_strided_slice %90 {offsets = [0, 384], sizes = [8, 128], strides = [1, 1]} : vector<8x512xf32> to vector<8x128xf32>
    %106 = arith.negf %105 : vector<8x128xf32>
    %107 = math.exp %106 : vector<8x128xf32>
    %cst_38 = arith.constant 1.000000e+00 : f32
    %108 = vector.broadcast %cst_38 : f32 to vector<8x128xf32>
    %109 = arith.addf %108, %107 : vector<8x128xf32>
    %110 = arith.divf %108, %109 : vector<8x128xf32>
    %111 = arith.mulf %102, %78 : vector<8x128xf32>
    %112 = arith.mulf %96, %104 : vector<8x128xf32>
    %113 = arith.addf %111, %112 : vector<8x128xf32>
    %114 = math.tanh %113 : vector<8x128xf32>
    %115 = arith.mulf %110, %114 : vector<8x128xf32>
    %116 = arith.index_cast %c2_i32 : i32 to index
    %c0_39 = arith.constant 0 : index
    %c0_40 = arith.constant 0 : index
    %117 = vector.load %arg5[%116, %c0_39, %c0_40] : memref<8x8x128xf32, #tpu.memory_space<vmem>>, vector<1x8x128xf32>
    %118 = vector.shape_cast %117 : vector<1x8x128xf32> to vector<8x128xf32>
    %119 = vector.shape_cast %115 : vector<8x128xf32> to vector<1x8x128xf32>
    tpu.vector_store %arg5[%116, %c0_39, %c0_40], %119 {strides = array<i32>} : memref<8x8x128xf32, #tpu.memory_space<vmem>>, vector<1x8x128xf32>,
    %c3_i32 = arith.constant 3 : i32
    %120 = arith.index_cast %c3_i32 : i32 to index
    %c0_41 = arith.constant 0 : index
    %c0_42 = arith.constant 0 : index
    %121 = vector.load %arg8[%120, %c0_41, %c0_42] : memref<8x8x512xf32, #tpu.memory_space<vmem>>, vector<1x8x512xf32>
    %122 = vector.shape_cast %121 : vector<1x8x512xf32> to vector<8x512xf32>
    %123 = arith.truncf %115 : vector<8x128xf32> to vector<8x128xbf16>
    %cst_43 = arith.constant dense<0.000000e+00> : vector<8x512xf32>
    %124 = tpu.matmul %123, %12, %cst_43 {dimension_numbers = #tpu.dot_dimension_numbers<[1], [0], [0], [1], [0, 0, 1, 1], [], []>} : vector<8x128xbf16>, vector<128x512xbf16>, vector<8x512xf32> -> vector<8x512xf32>
    %125 = arith.addf %122, %124 : vector<8x512xf32>
    %126 = vector.extract_strided_slice %125 {offsets = [0, 0], sizes = [8, 128], strides = [1, 1]} : vector<8x512xf32> to vector<8x128xf32>
    %127 = arith.negf %126 : vector<8x128xf32>
    %128 = math.exp %127 : vector<8x128xf32>
    %cst_44 = arith.constant 1.000000e+00 : f32
    %129 = vector.broadcast %cst_44 : f32 to vector<8x128xf32>
    %130 = arith.addf %129, %128 : vector<8x128xf32>
    %131 = arith.divf %129, %130 : vector<8x128xf32>
    %132 = vector.extract_strided_slice %125 {offsets = [0, 128], sizes = [8, 128], strides = [1, 1]} : vector<8x512xf32> to vector<8x128xf32>
    %133 = arith.negf %132 : vector<8x128xf32>
    %134 = math.exp %133 : vector<8x128xf32>
    %cst_45 = arith.constant 1.000000e+00 : f32
    %135 = vector.broadcast %cst_45 : f32 to vector<8x128xf32>
    %136 = arith.addf %135, %134 : vector<8x128xf32>
    %137 = arith.divf %135, %136 : vector<8x128xf32>
    %138 = vector.extract_strided_slice %125 {offsets = [0, 256], sizes = [8, 128], strides = [1, 1]} : vector<8x512xf32> to vector<8x128xf32>
    %139 = math.tanh %138 : vector<8x128xf32>
    %140 = vector.extract_strided_slice %125 {offsets = [0, 384], sizes = [8, 128], strides = [1, 1]} : vector<8x512xf32> to vector<8x128xf32>
    %141 = arith.negf %140 : vector<8x128xf32>
    %142 = math.exp %141 : vector<8x128xf32>
    %cst_46 = arith.constant 1.000000e+00 : f32
    %143 = vector.broadcast %cst_46 : f32 to vector<8x128xf32>
    %144 = arith.addf %143, %142 : vector<8x128xf32>
    %145 = arith.divf %143, %144 : vector<8x128xf32>
    %146 = arith.mulf %137, %113 : vector<8x128xf32>
    %147 = arith.mulf %131, %139 : vector<8x128xf32>
    %148 = arith.addf %146, %147 : vector<8x128xf32>
    %149 = math.tanh %148 : vector<8x128xf32>
    %150 = arith.mulf %145, %149 : vector<8x128xf32>
    %151 = arith.index_cast %c3_i32 : i32 to index
    %c0_47 = arith.constant 0 : index
    %c0_48 = arith.constant 0 : index
    %152 = vector.load %arg5[%151, %c0_47, %c0_48] : memref<8x8x128xf32, #tpu.memory_space<vmem>>, vector<1x8x128xf32>
    %153 = vector.shape_cast %152 : vector<1x8x128xf32> to vector<8x128xf32>
    %154 = vector.shape_cast %150 : vector<8x128xf32> to vector<1x8x128xf32>
    tpu.vector_store %arg5[%151, %c0_47, %c0_48], %154 {strides = array<i32>} : memref<8x8x128xf32, #tpu.memory_space<vmem>>, vector<1x8x128xf32>,
    %c4_i32 = arith.constant 4 : i32
    %155 = arith.index_cast %c4_i32 : i32 to index
    %c0_49 = arith.constant 0 : index
    %c0_50 = arith.constant 0 : index
    %156 = vector.load %arg8[%155, %c0_49, %c0_50] : memref<8x8x512xf32, #tpu.memory_space<vmem>>, vector<1x8x512xf32>
    %157 = vector.shape_cast %156 : vector<1x8x512xf32> to vector<8x512xf32>
    %158 = arith.truncf %150 : vector<8x128xf32> to vector<8x128xbf16>
    %cst_51 = arith.constant dense<0.000000e+00> : vector<8x512xf32>
    %159 = tpu.matmul %158, %12, %cst_51 {dimension_numbers = #tpu.dot_dimension_numbers<[1], [0], [0], [1], [0, 0, 1, 1], [], []>} : vector<8x128xbf16>, vector<128x512xbf16>, vector<8x512xf32> -> vector<8x512xf32>
    %160 = arith.addf %157, %159 : vector<8x512xf32>
    %161 = vector.extract_strided_slice %160 {offsets = [0, 0], sizes = [8, 128], strides = [1, 1]} : vector<8x512xf32> to vector<8x128xf32>
    %162 = arith.negf %161 : vector<8x128xf32>
    %163 = math.exp %162 : vector<8x128xf32>
    %cst_52 = arith.constant 1.000000e+00 : f32
    %164 = vector.broadcast %cst_52 : f32 to vector<8x128xf32>
    %165 = arith.addf %164, %163 : vector<8x128xf32>
    %166 = arith.divf %164, %165 : vector<8x128xf32>
    %167 = vector.extract_strided_slice %160 {offsets = [0, 128], sizes = [8, 128], strides = [1, 1]} : vector<8x512xf32> to vector<8x128xf32>
    %168 = arith.negf %167 : vector<8x128xf32>
    %169 = math.exp %168 : vector<8x128xf32>
    %cst_53 = arith.constant 1.000000e+00 : f32
    %170 = vector.broadcast %cst_53 : f32 to vector<8x128xf32>
    %171 = arith.addf %170, %169 : vector<8x128xf32>
    %172 = arith.divf %170, %171 : vector<8x128xf32>
    %173 = vector.extract_strided_slice %160 {offsets = [0, 256], sizes = [8, 128], strides = [1, 1]} : vector<8x512xf32> to vector<8x128xf32>
    %174 = math.tanh %173 : vector<8x128xf32>
    %175 = vector.extract_strided_slice %160 {offsets = [0, 384], sizes = [8, 128], strides = [1, 1]} : vector<8x512xf32> to vector<8x128xf32>
    %176 = arith.negf %175 : vector<8x128xf32>
    %177 = math.exp %176 : vector<8x128xf32>
    %cst_54 = arith.constant 1.000000e+00 : f32
    %178 = vector.broadcast %cst_54 : f32 to vector<8x128xf32>
    %179 = arith.addf %178, %177 : vector<8x128xf32>
    %180 = arith.divf %178, %179 : vector<8x128xf32>
    %181 = arith.mulf %172, %148 : vector<8x128xf32>
    %182 = arith.mulf %166, %174 : vector<8x128xf32>
    %183 = arith.addf %181, %182 : vector<8x128xf32>
    %184 = math.tanh %183 : vector<8x128xf32>
    %185 = arith.mulf %180, %184 : vector<8x128xf32>
    %186 = arith.index_cast %c4_i32 : i32 to index
    %c0_55 = arith.constant 0 : index
    %c0_56 = arith.constant 0 : index
    %187 = vector.load %arg5[%186, %c0_55, %c0_56] : memref<8x8x128xf32, #tpu.memory_space<vmem>>, vector<1x8x128xf32>
    %188 = vector.shape_cast %187 : vector<1x8x128xf32> to vector<8x128xf32>
    %189 = vector.shape_cast %185 : vector<8x128xf32> to vector<1x8x128xf32>
    tpu.vector_store %arg5[%186, %c0_55, %c0_56], %189 {strides = array<i32>} : memref<8x8x128xf32, #tpu.memory_space<vmem>>, vector<1x8x128xf32>,
    %c5_i32 = arith.constant 5 : i32
    %190 = arith.index_cast %c5_i32 : i32 to index
    %c0_57 = arith.constant 0 : index
    %c0_58 = arith.constant 0 : index
    %191 = vector.load %arg8[%190, %c0_57, %c0_58] : memref<8x8x512xf32, #tpu.memory_space<vmem>>, vector<1x8x512xf32>
    %192 = vector.shape_cast %191 : vector<1x8x512xf32> to vector<8x512xf32>
    %193 = arith.truncf %185 : vector<8x128xf32> to vector<8x128xbf16>
    %cst_59 = arith.constant dense<0.000000e+00> : vector<8x512xf32>
    %194 = tpu.matmul %193, %12, %cst_59 {dimension_numbers = #tpu.dot_dimension_numbers<[1], [0], [0], [1], [0, 0, 1, 1], [], []>} : vector<8x128xbf16>, vector<128x512xbf16>, vector<8x512xf32> -> vector<8x512xf32>
    %195 = arith.addf %192, %194 : vector<8x512xf32>
    %196 = vector.extract_strided_slice %195 {offsets = [0, 0], sizes = [8, 128], strides = [1, 1]} : vector<8x512xf32> to vector<8x128xf32>
    %197 = arith.negf %196 : vector<8x128xf32>
    %198 = math.exp %197 : vector<8x128xf32>
    %cst_60 = arith.constant 1.000000e+00 : f32
    %199 = vector.broadcast %cst_60 : f32 to vector<8x128xf32>
    %200 = arith.addf %199, %198 : vector<8x128xf32>
    %201 = arith.divf %199, %200 : vector<8x128xf32>
    %202 = vector.extract_strided_slice %195 {offsets = [0, 128], sizes = [8, 128], strides = [1, 1]} : vector<8x512xf32> to vector<8x128xf32>
    %203 = arith.negf %202 : vector<8x128xf32>
    %204 = math.exp %203 : vector<8x128xf32>
    %cst_61 = arith.constant 1.000000e+00 : f32
    %205 = vector.broadcast %cst_61 : f32 to vector<8x128xf32>
    %206 = arith.addf %205, %204 : vector<8x128xf32>
    %207 = arith.divf %205, %206 : vector<8x128xf32>
    %208 = vector.extract_strided_slice %195 {offsets = [0, 256], sizes = [8, 128], strides = [1, 1]} : vector<8x512xf32> to vector<8x128xf32>
    %209 = math.tanh %208 : vector<8x128xf32>
    %210 = vector.extract_strided_slice %195 {offsets = [0, 384], sizes = [8, 128], strides = [1, 1]} : vector<8x512xf32> to vector<8x128xf32>
    %211 = arith.negf %210 : vector<8x128xf32>
    %212 = math.exp %211 : vector<8x128xf32>
    %cst_62 = arith.constant 1.000000e+00 : f32
    %213 = vector.broadcast %cst_62 : f32 to vector<8x128xf32>
    %214 = arith.addf %213, %212 : vector<8x128xf32>
    %215 = arith.divf %213, %214 : vector<8x128xf32>
    %216 = arith.mulf %207, %183 : vector<8x128xf32>
    %217 = arith.mulf %201, %209 : vector<8x128xf32>
    %218 = arith.addf %216, %217 : vector<8x128xf32>
    %219 = math.tanh %218 : vector<8x128xf32>
    %220 = arith.mulf %215, %219 : vector<8x128xf32>
    %221 = arith.index_cast %c5_i32 : i32 to index
    %c0_63 = arith.constant 0 : index
    %c0_64 = arith.constant 0 : index
    %222 = vector.load %arg5[%221, %c0_63, %c0_64] : memref<8x8x128xf32, #tpu.memory_space<vmem>>, vector<1x8x128xf32>
    %223 = vector.shape_cast %222 : vector<1x8x128xf32> to vector<8x128xf32>
    %224 = vector.shape_cast %220 : vector<8x128xf32> to vector<1x8x128xf32>
    tpu.vector_store %arg5[%221, %c0_63, %c0_64], %224 {strides = array<i32>} : memref<8x8x128xf32, #tpu.memory_space<vmem>>, vector<1x8x128xf32>,
    %c6_i32 = arith.constant 6 : i32
    %225 = arith.index_cast %c6_i32 : i32 to index
    %c0_65 = arith.constant 0 : index
    %c0_66 = arith.constant 0 : index
    %226 = vector.load %arg8[%225, %c0_65, %c0_66] : memref<8x8x512xf32, #tpu.memory_space<vmem>>, vector<1x8x512xf32>
    %227 = vector.shape_cast %226 : vector<1x8x512xf32> to vector<8x512xf32>
    %228 = arith.truncf %220 : vector<8x128xf32> to vector<8x128xbf16>
    %cst_67 = arith.constant dense<0.000000e+00> : vector<8x512xf32>
    %229 = tpu.matmul %228, %12, %cst_67 {dimension_numbers = #tpu.dot_dimension_numbers<[1], [0], [0], [1], [0, 0, 1, 1], [], []>} : vector<8x128xbf16>, vector<128x512xbf16>, vector<8x512xf32> -> vector<8x512xf32>
    %230 = arith.addf %227, %229 : vector<8x512xf32>
    %231 = vector.extract_strided_slice %230 {offsets = [0, 0], sizes = [8, 128], strides = [1, 1]} : vector<8x512xf32> to vector<8x128xf32>
    %232 = arith.negf %231 : vector<8x128xf32>
    %233 = math.exp %232 : vector<8x128xf32>
    %cst_68 = arith.constant 1.000000e+00 : f32
    %234 = vector.broadcast %cst_68 : f32 to vector<8x128xf32>
    %235 = arith.addf %234, %233 : vector<8x128xf32>
    %236 = arith.divf %234, %235 : vector<8x128xf32>
    %237 = vector.extract_strided_slice %230 {offsets = [0, 128], sizes = [8, 128], strides = [1, 1]} : vector<8x512xf32> to vector<8x128xf32>
    %238 = arith.negf %237 : vector<8x128xf32>
    %239 = math.exp %238 : vector<8x128xf32>
    %cst_69 = arith.constant 1.000000e+00 : f32
    %240 = vector.broadcast %cst_69 : f32 to vector<8x128xf32>
    %241 = arith.addf %240, %239 : vector<8x128xf32>
    %242 = arith.divf %240, %241 : vector<8x128xf32>
    %243 = vector.extract_strided_slice %230 {offsets = [0, 256], sizes = [8, 128], strides = [1, 1]} : vector<8x512xf32> to vector<8x128xf32>
    %244 = math.tanh %243 : vector<8x128xf32>
    %245 = vector.extract_strided_slice %230 {offsets = [0, 384], sizes = [8, 128], strides = [1, 1]} : vector<8x512xf32> to vector<8x128xf32>
    %246 = arith.negf %245 : vector<8x128xf32>
    %247 = math.exp %246 : vector<8x128xf32>
    %cst_70 = arith.constant 1.000000e+00 : f32
    %248 = vector.broadcast %cst_70 : f32 to vector<8x128xf32>
    %249 = arith.addf %248, %247 : vector<8x128xf32>
    %250 = arith.divf %248, %249 : vector<8x128xf32>
    %251 = arith.mulf %242, %218 : vector<8x128xf32>
    %252 = arith.mulf %236, %244 : vector<8x128xf32>
    %253 = arith.addf %251, %252 : vector<8x128xf32>
    %254 = math.tanh %253 : vector<8x128xf32>
    %255 = arith.mulf %250, %254 : vector<8x128xf32>
    %256 = arith.index_cast %c6_i32 : i32 to index
    %c0_71 = arith.constant 0 : index
    %c0_72 = arith.constant 0 : index
    %257 = vector.load %arg5[%256, %c0_71, %c0_72] : memref<8x8x128xf32, #tpu.memory_space<vmem>>, vector<1x8x128xf32>
    %258 = vector.shape_cast %257 : vector<1x8x128xf32> to vector<8x128xf32>
    %259 = vector.shape_cast %255 : vector<8x128xf32> to vector<1x8x128xf32>
    tpu.vector_store %arg5[%256, %c0_71, %c0_72], %259 {strides = array<i32>} : memref<8x8x128xf32, #tpu.memory_space<vmem>>, vector<1x8x128xf32>,
    %c7_i32 = arith.constant 7 : i32
    %260 = arith.index_cast %c7_i32 : i32 to index
    %c0_73 = arith.constant 0 : index
    %c0_74 = arith.constant 0 : index
    %261 = vector.load %arg8[%260, %c0_73, %c0_74] : memref<8x8x512xf32, #tpu.memory_space<vmem>>, vector<1x8x512xf32>
    %262 = vector.shape_cast %261 : vector<1x8x512xf32> to vector<8x512xf32>
    %263 = arith.truncf %255 : vector<8x128xf32> to vector<8x128xbf16>
    %cst_75 = arith.constant dense<0.000000e+00> : vector<8x512xf32>
    %264 = tpu.matmul %263, %12, %cst_75 {dimension_numbers = #tpu.dot_dimension_numbers<[1], [0], [0], [1], [0, 0, 1, 1], [], []>} : vector<8x128xbf16>, vector<128x512xbf16>, vector<8x512xf32> -> vector<8x512xf32>
    %265 = arith.addf %262, %264 : vector<8x512xf32>
    %266 = vector.extract_strided_slice %265 {offsets = [0, 0], sizes = [8, 128], strides = [1, 1]} : vector<8x512xf32> to vector<8x128xf32>
    %267 = arith.negf %266 : vector<8x128xf32>
    %268 = math.exp %267 : vector<8x128xf32>
    %cst_76 = arith.constant 1.000000e+00 : f32
    %269 = vector.broadcast %cst_76 : f32 to vector<8x128xf32>
    %270 = arith.addf %269, %268 : vector<8x128xf32>
    %271 = arith.divf %269, %270 : vector<8x128xf32>
    %272 = vector.extract_strided_slice %265 {offsets = [0, 128], sizes = [8, 128], strides = [1, 1]} : vector<8x512xf32> to vector<8x128xf32>
    %273 = arith.negf %272 : vector<8x128xf32>
    %274 = math.exp %273 : vector<8x128xf32>
    %cst_77 = arith.constant 1.000000e+00 : f32
    %275 = vector.broadcast %cst_77 : f32 to vector<8x128xf32>
    %276 = arith.addf %275, %274 : vector<8x128xf32>
    %277 = arith.divf %275, %276 : vector<8x128xf32>
    %278 = vector.extract_strided_slice %265 {offsets = [0, 256], sizes = [8, 128], strides = [1, 1]} : vector<8x512xf32> to vector<8x128xf32>
    %279 = math.tanh %278 : vector<8x128xf32>
    %280 = vector.extract_strided_slice %265 {offsets = [0, 384], sizes = [8, 128], strides = [1, 1]} : vector<8x512xf32> to vector<8x128xf32>
    %281 = arith.negf %280 : vector<8x128xf32>
    %282 = math.exp %281 : vector<8x128xf32>
    %cst_78 = arith.constant 1.000000e+00 : f32
    %283 = vector.broadcast %cst_78 : f32 to vector<8x128xf32>
    %284 = arith.addf %283, %282 : vector<8x128xf32>
    %285 = arith.divf %283, %284 : vector<8x128xf32>
    %286 = arith.mulf %277, %253 : vector<8x128xf32>
    %287 = arith.mulf %271, %279 : vector<8x128xf32>
    %288 = arith.addf %286, %287 : vector<8x128xf32>
    %289 = math.tanh %288 : vector<8x128xf32>
    %290 = arith.mulf %285, %289 : vector<8x128xf32>
    %291 = arith.index_cast %c7_i32 : i32 to index
    %c0_79 = arith.constant 0 : index
    %c0_80 = arith.constant 0 : index
    %292 = vector.load %arg5[%291, %c0_79, %c0_80] : memref<8x8x128xf32, #tpu.memory_space<vmem>>, vector<1x8x128xf32>
    %293 = vector.shape_cast %292 : vector<1x8x128xf32> to vector<8x128xf32>
    %294 = vector.shape_cast %290 : vector<8x128xf32> to vector<1x8x128xf32>
    tpu.vector_store %arg5[%291, %c0_79, %c0_80], %294 {strides = array<i32>} : memref<8x8x128xf32, #tpu.memory_space<vmem>>, vector<1x8x128xf32>,
    %c8_i32 = arith.constant 8 : i32
    %c0_81 = arith.constant 0 : index
    %c0_82 = arith.constant 0 : index
    %295 = vector.load %arg6[%c0_81, %c0_82] : memref<8x128xf32, #tpu.memory_space<vmem>>, vector<8x128xf32>
    tpu.vector_store %arg6[%c0_81, %c0_82], %290 {strides = array<i32>} : memref<8x128xf32, #tpu.memory_space<vmem>>, vector<8x128xf32>,
    %c0_83 = arith.constant 0 : index
    %c0_84 = arith.constant 0 : index
    %296 = vector.load %arg7[%c0_83, %c0_84] : memref<8x128xf32, #tpu.memory_space<vmem>>, vector<8x128xf32>
    tpu.vector_store %arg7[%c0_83, %c0_84], %288 {strides = array<i32>} : memref<8x128xf32, #tpu.memory_space<vmem>>, vector<8x128xf32>,
    return
  }
  func.func @transform_0(%arg0: i32) -> (i32, i32, i32) {
    %c0_i32 = arith.constant 0 : i32
    %c0_i32_0 = arith.constant 0 : i32
    %c0_i32_1 = arith.constant 0 : i32
    return %arg0, %c0_i32, %c0_i32_0 : i32, i32, i32
  }
  func.func @transform_1(%arg0: i32) -> (i32, i32) {
    %c0_i32 = arith.constant 0 : i32
    %c0_i32_0 = arith.constant 0 : i32
    %c0_i32_1 = arith.constant 0 : i32
    return %c0_i32, %c0_i32_0 : i32, i32
  }
  func.func @transform_2(%arg0: i32) -> (i32, i32) {
    %c0_i32 = arith.constant 0 : i32
    %c0_i32_0 = arith.constant 0 : i32
    %c0_i32_1 = arith.constant 0 : i32
    return %c0_i32, %c0_i32_0 : i32, i32
  }
  func.func @transform_3(%arg0: i32) -> (i32, i32) {
    %c0_i32 = arith.constant 0 : i32
    %c0_i32_0 = arith.constant 0 : i32
    %c0_i32_1 = arith.constant 0 : i32
    return %c0_i32, %c0_i32_0 : i32, i32
  }
  func.func @transform_4(%arg0: i32) -> (i32, i32, i32) {
    %c0_i32 = arith.constant 0 : i32
    %c0_i32_0 = arith.constant 0 : i32
    %c0_i32_1 = arith.constant 0 : i32
    return %arg0, %c0_i32, %c0_i32_0 : i32, i32, i32
  }
}

</mosaic_0001>

<llo_original>
// kernel: tpu_custom_call.1
$region0: #{tpu_custom_call.1}
  #allocation0 [shape = 'u32[]', space=smem, size = 0x4, offset = 0x4, fixed_abs, tag = 'smem constant byte address 0x4 - core index']
  #allocation1 [shape = 'u32[72,128]{1,0:T(1,128)}', space=vmem, size = 0x9000, scoped, tag = 'internal scratch']
  #allocation2 [shape = 'f32[8,128]{1,0:T(8,128)}', space=vmem, size = 0x1000, scoped, tag = 'scratch operand']
  #allocation3 [shape = 'f32[8,128]{1,0:T(8,128)}', space=vmem, size = 0x1000, scoped, tag = 'scratch operand']
  #allocation4 [shape = 'f32[8,8,512]{2,1,0:T(8,128)}', space=vmem, size = 0x20000, scoped, tag = 'scratch operand']
  %s0 = inlined_call_operand.hbm [shape: bf16[16,8,128], index: 0, kind: input, shape index: {}]
  %s1 = inlined_call_operand.hbm [shape: bf16[128,512], index: 1, kind: input, shape index: {}]
  %s2 = inlined_call_operand.hbm [shape: bf16[128,512], index: 2, kind: input, shape index: {}]
  %s3 = inlined_call_operand.hbm [shape: f32[1,512], index: 3, kind: input, shape index: {}]
  %s4 = inlined_call_operand.hbm [shape: f32[16,8,128], index: 4, kind: output, shape index: {}]
  %s5 = sld [smem:[#allocation0]]
  $region69: #{tpu_custom_call.1} parent=0
    _
  %s7 = ssub.s32 1, %s5
  %s8 = scalar_select 0, %s7, %s5
  $region1: #{tpu_custom_call.1} parent=0
    #allocation5 [shape = 'u8[32768]{0}', space=vmem, size = 0x8000, scoped, tag = 'input window, operand 0']
    #allocation6 [shape = 's32[2]{0}', space=sflag, size = 0x8, scoped, tag = 'scoped memory for tpu_custom_call.1']
    #allocation7 [shape = 's32[2]{0}', space=sflag, size = 0x8, scoped, tag = 'scoped memory for tpu_custom_call.1']
    #allocation8 [shape = 'u8[131072]{0}', space=vmem, size = 0x20000, scoped, tag = 'input window, operand 1, single buffered']
    #allocation9 [shape = 's32[1]{0}', space=sflag, size = 0x4, scoped, tag = 'scoped memory for tpu_custom_call.1']
    #allocation10 [shape = 'u8[131072]{0}', space=vmem, size = 0x20000, scoped, tag = 'input window, operand 2, single buffered']
    #allocation11 [shape = 'u8[2048]{0}', space=vmem, size = 0x800, scoped, tag = 'input window, operand 3, single buffered']
    #allocation12 [shape = 's32[1]{0}', space=sflag, size = 0x4, scoped, tag = 'scoped memory for tpu_custom_call.1']
    #allocation13 [shape = 'u8[65536]{0}', space=vmem, size = 0x10000, scoped, tag = 'output window, operand 0']
    %9 = vsyncpa [#allocation6], 0
    %s10 = scalar_lea.sflag [#allocation6], 1
    %11 = vsyncpa %s10, 0
    %12 = vsyncpa [#allocation9], 0
    %13 = vsyncpa [#allocation12], 0
    %14 = vsyncpa [#allocation7], 0
    %s15 = scalar_lea.sflag [#allocation7], 1
    %16 = vsyncpa %s15, 0
    loop: start=0, step=1, limit=4
    $region2: #{tpu_custom_call.1} parent=1 // loop_pre_header
      _
    $region3: #{tpu_custom_call.1} parent=1 // loop_header
      %s18 = sphi 0, %s22
      %p19 = scmp.ge.s32.totalorder %s18, 4
      %s28 = sphi 0, %s30
      %s31 = sphi 0, %s28
      %s32 = sphi 0, %s31
      %s48 = sphi 0, %s32
      %s52 = sphi 0, %s52
      %s54 = sphi 0, %s52
      %s55 = sphi 0, %s54
      %s69 = sphi 0, %s55
      %s73 = sphi 0, %s73
      %s75 = sphi 0, %s73
      %s76 = sphi 0, %s75
      %s90 = sphi 0, %s76
      %s94 = sphi 0, %s94
      %s96 = sphi 0, %s94
      %s97 = sphi 0, %s96
      %s111 = sphi 0, %s97
      %s117 = sphi 0, %s119
      %s120 = sphi 0, %s117
      %s121 = sphi 0, %s120
      %s137 = sphi 0, %s121
    $region4: #{tpu_custom_call.1} parent=1 // loop_header_branch
      %21 = sbr.rel (%p19) target = $region8
    $region5: #{tpu_custom_call.1} parent=1 // loop_body
      %s23 = ssub.s32 %s18, 1
      %s24 = ssub.s32 %s18, 2
      %s25 = sadd.s32 %s18, 1
      %s26 = ssub.s32 %s18, %s25
      %p27 = scmp.eq.s32.totalorder %s26, 0
      %s29 = sadd.s32 %s28, 1
      %s30 = scalar_select %p27, %s28, %s29
      %p33 = pneg %p27
      %p34 = scmp.eq.s32.totalorder %s18, 1
      %p35 = por %p33, %p34
      %p36 = scmp.ne.s32.totalorder %s28, %s31
      %p37 = scmp.eq.s32.totalorder %s18, 0
      %p38 = por %p36, %p37
      %p39 = scmp.ne.s32.totalorder %s28, %s31
      %p40 = scmp.eq.s32.totalorder %s23, 1
      %p41 = por %p39, %p40
      %p42 = scmp.ne.s32.totalorder %s31, %s32
      %p43 = scmp.eq.s32.totalorder %s23, 0
      %p44 = por %p42, %p43
      %p45 = scmp.ne.s32.totalorder %s31, %s32
      %p46 = scmp.eq.s32.totalorder %s24, 1
      %p47 = por %p45, %p46
      %p49 = scmp.ne.s32.totalorder %s32, %s48
      %p50 = scmp.eq.s32.totalorder %s24, 0
      %p51 = por %p49, %p50
      %s53 = sadd.s32 %s52, 1
      %p56 = scmp.eq.s32.totalorder %s18, 1
      %p57 = scmp.ne.s32.totalorder %s52, %s54
      %p58 = scmp.eq.s32.totalorder %s18, 0
      %p59 = por %p57, %p58
      %p60 = scmp.ne.s32.totalorder %s52, %s54
      %p61 = scmp.eq.s32.totalorder %s23, 1
      %p62 = por %p60, %p61
      %p63 = scmp.ne.s32.totalorder %s54, %s55
      %p64 = scmp.eq.s32.totalorder %s23, 0
      %p65 = por %p63, %p64
      %p66 = scmp.ne.s32.totalorder %s54, %s55
      %p67 = scmp.eq.s32.totalorder %s24, 1
      %p68 = por %p66, %p67
      %p70 = scmp.ne.s32.totalorder %s55, %s69
      %p71 = scmp.eq.s32.totalorder %s24, 0
      %p72 = por %p70, %p71
      %s74 = sadd.s32 %s73, 1
      %p77 = scmp.eq.s32.totalorder %s18, 1
      %p78 = scmp.ne.s32.totalorder %s73, %s75
      %p79 = scmp.eq.s32.totalorder %s18, 0
      %p80 = por %p78, %p79
      %p81 = scmp.ne.s32.totalorder %s73, %s75
      %p82 = scmp.eq.s32.totalorder %s23, 1
      %p83 = por %p81, %p82
      %p84 = scmp.ne.s32.totalorder %s75, %s76
      %p85 = scmp.eq.s32.totalorder %s23, 0
      %p86 = por %p84, %p85
      %p87 = scmp.ne.s32.totalorder %s75, %s76
      %p88 = scmp.eq.s32.totalorder %s24, 1
      %p89 = por %p87, %p88
      %p91 = scmp.ne.s32.totalorder %s76, %s90
      %p92 = scmp.eq.s32.totalorder %s24, 0
      %p93 = por %p91, %p92
      %s95 = sadd.s32 %s94, 1
      %p98 = scmp.eq.s32.totalorder %s18, 1
      %p99 = scmp.ne.s32.totalorder %s94, %s96
      %p100 = scmp.eq.s32.totalorder %s18, 0
      %p101 = por %p99, %p100
      %p102 = scmp.ne.s32.totalorder %s94, %s96
      %p103 = scmp.eq.s32.totalorder %s23, 1
      %p104 = por %p102, %p103
      %p105 = scmp.ne.s32.totalorder %s96, %s97
      %p106 = scmp.eq.s32.totalorder %s23, 0
      %p107 = por %p105, %p106
      %p108 = scmp.ne.s32.totalorder %s96, %s97
      %p109 = scmp.eq.s32.totalorder %s24, 1
      %p110 = por %p108, %p109
      %p112 = scmp.ne.s32.totalorder %s97, %s111
      %p113 = scmp.eq.s32.totalorder %s24, 0
      %p114 = por %p112, %p113
      %s115 = ssub.s32 %s18, %s25
      %p116 = scmp.eq.s32.totalorder %s115, 0
      %s118 = sadd.s32 %s117, 1
      %s119 = scalar_select %p116, %s117, %s118
      %p122 = pneg %p116
      %p123 = scmp.eq.s32.totalorder %s18, 1
      %p124 = por %p122, %p123
      %p125 = scmp.ne.s32.totalorder %s117, %s120
      %p126 = scmp.eq.s32.totalorder %s18, 0
      %p127 = por %p125, %p126
      %p128 = scmp.ne.s32.totalorder %s117, %s120
      %p129 = scmp.eq.s32.totalorder %s23, 1
      %p130 = por %p128, %p129
      %p131 = scmp.ne.s32.totalorder %s120, %s121
      %p132 = scmp.eq.s32.totalorder %s23, 0
      %p133 = por %p131, %p132
      %p134 = scmp.ne.s32.totalorder %s120, %s121
      %p135 = scmp.eq.s32.totalorder %s24, 1
      %p136 = por %p134, %p135
      %p138 = scmp.ne.s32.totalorder %s121, %s137
      %p139 = scmp.eq.s32.totalorder %s24, 0
      %p140 = por %p138, %p139
      %p141 = scmp.le.s32.totalorder 1, %s18
      %p142 = scmp.lt.s32.totalorder %s18, 3
      %p143 = pnand %p141, %p142
      %p144 = pneg %p143
      // Predicated region
      $region9: #{tpu_custom_call.1} parent=5 // pred_check
        _
      $region10: #{tpu_custom_call.1} parent=5 // pred_check_branch
        %146 = sbr.rel (%p143) target = $region12
      $region11: #{tpu_custom_call.1} parent=5 // pred_region
        %s147 = ssub.s32 %s18, 1
        // Predicated region
        $region13: #{tpu_custom_call.1} parent=11 // pred_check
          %p148 = pneg %p65
        $region14: #{tpu_custom_call.1} parent=11 // pred_check_branch
          %150 = sbr.rel (%p148) target = $region16
        $region15: #{tpu_custom_call.1} parent=11 // pred_region
          %152 = vsyncadd [#allocation9], 0
          %s153 = sshll.u32 %s1, 4
          %s154 = int_to_ptr.hbm [resolvable:$true] %s153
          %s155 = sshll.u32 [#allocation8], 4
          %s156 = int_to_ptr.vmem [resolvable:$true] %s155
          %161 = dma.hbm_to_vmem [thread:$0]  %s154, 4096, %s156, [#allocation9], 256, 256, 16
        $region16: #{tpu_custom_call.1} parent=11 // pred_fallthru
          _
        // Predicated region
        $region17: #{tpu_custom_call.1} parent=11 // pred_check
          %p162 = pneg %p86
        $region18: #{tpu_custom_call.1} parent=11 // pred_check_branch
          %164 = sbr.rel (%p162) target = $region20
        $region19: #{tpu_custom_call.1} parent=11 // pred_region
          %166 = vsyncadd [#allocation9], 0
          %s167 = sshll.u32 %s2, 4
          %s168 = int_to_ptr.hbm [resolvable:$true] %s167
          %s169 = sshll.u32 [#allocation10], 4
          %s170 = int_to_ptr.vmem [resolvable:$true] %s169
          %175 = dma.hbm_to_vmem [thread:$0]  %s168, 4096, %s170, [#allocation9], 256, 256, 16
        $region20: #{tpu_custom_call.1} parent=11 // pred_fallthru
          _
        // Predicated region
        $region21: #{tpu_custom_call.1} parent=11 // pred_check
          %p176 = pneg %p107
        $region22: #{tpu_custom_call.1} parent=11 // pred_check_branch
          %178 = sbr.rel (%p176) target = $region24
        $region23: #{tpu_custom_call.1} parent=11 // pred_region
          %180 = vsyncadd [#allocation12], 0
          %s182 = sshll.u32 %s3, 4
          %s183 = int_to_ptr.hbm [resolvable:$true] %s182
          %s184 = sshll.u32 [#allocation11], 4
          %s185 = int_to_ptr.vmem [resolvable:$true] %s184
          %187 = dma.hbm_to_vmem [thread:$0]  %s183, 64, %s185, [#allocation12]
        $region24: #{tpu_custom_call.1} parent=11 // pred_fallthru
          _
      $region12: #{tpu_custom_call.1} parent=5 // pred_fallthru
        _
      %p188 = scmp.lt.s32.totalorder %s18, 2
      // Predicated region
      $region25: #{tpu_custom_call.1} parent=5 // pred_check
        %p189 = pneg %p188
      $region26: #{tpu_custom_call.1} parent=5 // pred_check_branch
        %191 = sbr.rel (%p189) target = $region28
      $region27: #{tpu_custom_call.1} parent=5 // pred_region
        // Predicated region
        $region29: #{tpu_custom_call.1} parent=27 // pred_check
          %p192 = pneg %p38
        $region30: #{tpu_custom_call.1} parent=27 // pred_check_branch
          %194 = sbr.rel (%p192) target = $region32
        $region31: #{tpu_custom_call.1} parent=27 // pred_region
          %s195 = sand.u32 %s28, 1
          %s196 = scalar_lea.sflag [#allocation6], %s195
          %s197 = sand.u32 %s28, 1
          %s198 = smul.addr %s197, 32
          %s199 = scalar_lea.vmem [#allocation5], %s198
          %s200 = smul.u32 8, %s18
          %202 = vsyncadd %s196, 0
          %s203 = smul.addr %s200, 4
          %s204 = scalar_lea.hbm %s0, %s203
          %s205 = sshll.u32 %s204, 4
          %s206 = int_to_ptr.hbm [resolvable:$true] %s205
          %s207 = sshll.u32 %s199, 4
          %s208 = int_to_ptr.vmem [resolvable:$true] %s207
          %213 = dma.hbm_to_vmem [thread:$0]  %s206, 512, %s208, %s196, 64, 64, 4
        $region32: #{tpu_custom_call.1} parent=27 // pred_fallthru
          _
      $region28: #{tpu_custom_call.1} parent=5 // pred_fallthru
        _
      %p214 = scmp.le.s32.totalorder 1, %s18
      %p215 = scmp.lt.s32.totalorder %s18, 3
      %p216 = pnand %p214, %p215
      %p217 = pneg %p216
      // Predicated region
      $region33: #{tpu_custom_call.1} parent=5 // pred_check
        _
      $region34: #{tpu_custom_call.1} parent=5 // pred_check_branch
        %219 = sbr.rel (%p216) target = $region36
      $region35: #{tpu_custom_call.1} parent=5 // pred_region
        %s220 = ssub.s32 %s18, 1
        %s221 = sand.u32 %s31, 1
        %s222 = scalar_lea.sflag [#allocation6], %s221
        %s223 = sand.u32 %s31, 1
        %s224 = smul.addr %s223, 32
        %s225 = scalar_lea.vmem [#allocation5], %s224
        // Predicated region
        $region37: #{tpu_custom_call.1} parent=35 // pred_check
          %p226 = pneg %p44
        $region38: #{tpu_custom_call.1} parent=35 // pred_check_branch
          %228 = sbr.rel (%p226) target = $region40
        $region39: #{tpu_custom_call.1} parent=35 // pred_region
          %230 = dma.done %s222, 512
        $region40: #{tpu_custom_call.1} parent=35 // pred_fallthru
          _
        // Predicated region
        $region41: #{tpu_custom_call.1} parent=35 // pred_check
          %p231 = pneg %p65
        $region42: #{tpu_custom_call.1} parent=35 // pred_check_branch
          %233 = sbr.rel (%p231) target = $region44
        $region43: #{tpu_custom_call.1} parent=35 // pred_region
          %235 = dma.done [#allocation9], 4096
        $region44: #{tpu_custom_call.1} parent=35 // pred_fallthru
          _
        // Predicated region
        $region45: #{tpu_custom_call.1} parent=35 // pred_check
          %p236 = pneg %p86
        $region46: #{tpu_custom_call.1} parent=35 // pred_check_branch
          %238 = sbr.rel (%p236) target = $region48
        $region47: #{tpu_custom_call.1} parent=35 // pred_region
          %240 = dma.done [#allocation9], 4096
        $region48: #{tpu_custom_call.1} parent=35 // pred_fallthru
          _
        // Predicated region
        $region49: #{tpu_custom_call.1} parent=35 // pred_check
          %p241 = pneg %p107
        $region50: #{tpu_custom_call.1} parent=35 // pred_check_branch
          %243 = sbr.rel (%p241) target = $region52
        $region51: #{tpu_custom_call.1} parent=35 // pred_region
          %245 = dma.done [#allocation12], 64
        $region52: #{tpu_custom_call.1} parent=35 // pred_fallthru
          _
        %s246 = sand.u32 %s31, 1
        %s247 = scalar_lea.sflag [#allocation6], %s246
        %s248 = sand.u32 %s31, 1
        %s249 = smul.addr %s248, 32
        %s250 = scalar_lea.vmem [#allocation5], %s249
        %p251 = pneg %p44
        %p252 = pneg %p41
        %p253 = pneg %p65
        %p254 = pneg %p62
        %p255 = pneg %p86
        %p256 = pneg %p83
        %p257 = pneg %p107
        %p258 = pneg %p104
        %p259 = pneg %p133
        %p260 = pneg %p130
        %s261 = sand.u32 %s120, 1
        %s262 = scalar_lea.sflag [#allocation7], %s261
        %s263 = sand.u32 %s120, 1
        %s264 = smul.addr %s263, 64
        %s265 = scalar_lea.vmem [#allocation13], %s264
        %s266 = smul.u32 8, %s23
        %s267 = smul.u32 8, %s23
        %p268 = scmp.eq.s32.totalorder %s23, 0
        // Predicated region
        $region53: #{tpu_custom_call.1} parent=35 // pred_check
          %p269 = pneg %p268
        $region54: #{tpu_custom_call.1} parent=35 // pred_check_branch
          %271 = sbr.rel (%p269) target = $region56
        $region55: #{tpu_custom_call.1} parent=35 // pred_region
          %272 = vst [vmem:[#allocation2] sm:$0xff] 0.0
          %273 = vst [vmem:[#allocation3] sm:$0xff] 0.0
        $region56: #{tpu_custom_call.1} parent=35 // pred_fallthru
          _
        %v274 = vld [vmem:[%s225] sm:$0xf]
        %v275 = vld [vmem:[%s225 + $0x4] sm:$0xf]
        %v276 = vld [vmem:[%s225 + $0x8] sm:$0xf]
        %v277 = vld [vmem:[%s225 + $0xc] sm:$0xf]
        %v278 = vld [vmem:[%s225 + $0x10] sm:$0xf]
        %v279 = vld [vmem:[%s225 + $0x14] sm:$0xf]
        %v280 = vld [vmem:[%s225 + $0x18] sm:$0xf]
        %v281 = vld [vmem:[%s225 + $0x1c] sm:$0xf]
        %v282 = vld [vmem:[#allocation8] sm:$0xff]
        %v283 = vld [vmem:[#allocation8 + $0x8] sm:$0xff]
        %v284 = vld [vmem:[#allocation8 + $0x10] sm:$0xff]
        %v285 = vld [vmem:[#allocation8 + $0x18] sm:$0xff]
        %v286 = vld [vmem:[#allocation8 + $0x20] sm:$0xff]
        %v287 = vld [vmem:[#allocation8 + $0x28] sm:$0xff]
        %v288 = vld [vmem:[#allocation8 + $0x30] sm:$0xff]
        %v289 = vld [vmem:[#allocation8 + $0x38] sm:$0xff]
        %v290 = vld [vmem:[#allocation8 + $0x40] sm:$0xff]
        %v291 = vld [vmem:[#allocation8 + $0x48] sm:$0xff]
        %v292 = vld [vmem:[#allocation8 + $0x50] sm:$0xff]
        %v293 = vld [vmem:[#allocation8 + $0x58] sm:$0xff]
        %v294 = vld [vmem:[#allocation8 + $0x60] sm:$0xff]
        %v295 = vld [vmem:[#allocation8 + $0x68] sm:$0xff]
        %v296 = vld [vmem:[#allocation8 + $0x70] sm:$0xff]
        %v297 = vld [vmem:[#allocation8 + $0x78] sm:$0xff]
        %v298 = vld [vmem:[#allocation8 + $0x80] sm:$0xff]
        %v299 = vld [vmem:[#allocation8 + $0x88] sm:$0xff]
        %v300 = vld [vmem:[#allocation8 + $0x90] sm:$0xff]
        %v301 = vld [vmem:[#allocation8 + $0x98] sm:$0xff]
        %v302 = vld [vmem:[#allocation8 + $0xa0] sm:$0xff]
        %v303 = vld [vmem:[#allocation8 + $0xa8] sm:$0xff]
        %v304 = vld [vmem:[#allocation8 + $0xb0] sm:$0xff]
        %v305 = vld [vmem:[#allocation8 + $0xb8] sm:$0xff]
        %v306 = vld [vmem:[#allocation8 + $0xc0] sm:$0xff]
        %v307 = vld [vmem:[#allocation8 + $0xc8] sm:$0xff]
        %v308 = vld [vmem:[#allocation8 + $0xd0] sm:$0xff]
        %v309 = vld [vmem:[#allocation8 + $0xd8] sm:$0xff]
        %v310 = vld [vmem:[#allocation8 + $0xe0] sm:$0xff]
        %v311 = vld [vmem:[#allocation8 + $0xe8] sm:$0xff]
        %v312 = vld [vmem:[#allocation8 + $0xf0] sm:$0xff]
        %v313 = vld [vmem:[#allocation8 + $0xf8] sm:$0xff]
        %v314 = vld [vmem:[#allocation11] sm:$0xf]
        %v316 = vperm.slane %v314, 0
        %v317 = vperm.slane %v314, 1
        %v318 = vperm.slane %v314, 2
        %v319 = vperm.slane %v314, 3
        %v332 = vunpack.c.l.b16 %v274
        %v333 = vunpack.c.l.b16 %v275
        %v334 = vunpack.c.l.b16 %v276
        %v335 = vunpack.c.l.b16 %v277
        %v336 = vunpack.c.l.b16 %v278
        %v337 = vunpack.c.l.b16 %v279
        %v338 = vunpack.c.l.b16 %v280
        %v339 = vunpack.c.l.b16 %v281
        %v340 = vpack.c.b16 %v333, %v332
        %v341 = vpack.c.b16 %v335, %v334
        %v342 = vpack.c.b16 %v337, %v336
        %v343 = vpack.c.b16 %v339, %v338
        %v380 = vunpack.c.l.b16 %v282
        %v381 = vunpack.c.h.b16 %v282
        %v382 = vunpack.c.l.b16 %v283
        %v383 = vunpack.c.h.b16 %v283
        %v384 = vunpack.c.l.b16 %v284
        %v385 = vunpack.c.h.b16 %v284
        %v386 = vunpack.c.l.b16 %v285
        %v387 = vunpack.c.h.b16 %v285
        %v388 = vunpack.c.l.b16 %v286
        %v389 = vunpack.c.h.b16 %v286
        %v390 = vunpack.c.l.b16 %v287
        %v391 = vunpack.c.h.b16 %v287
        %v392 = vunpack.c.l.b16 %v288
        %v393 = vunpack.c.h.b16 %v288
        %v394 = vunpack.c.l.b16 %v289
        %v395 = vunpack.c.h.b16 %v289
        %v396 = vunpack.c.l.b16 %v290
        %v397 = vunpack.c.h.b16 %v290
        %v398 = vunpack.c.l.b16 %v291
        %v399 = vunpack.c.h.b16 %v291
        %v400 = vunpack.c.l.b16 %v292
        %v401 = vunpack.c.h.b16 %v292
        %v402 = vunpack.c.l.b16 %v293
        %v403 = vunpack.c.h.b16 %v293
        %v404 = vunpack.c.l.b16 %v294
        %v405 = vunpack.c.h.b16 %v294
        %v406 = vunpack.c.l.b16 %v295
        %v407 = vunpack.c.h.b16 %v295
        %v408 = vunpack.c.l.b16 %v296
        %v409 = vunpack.c.h.b16 %v296
        %v410 = vunpack.c.l.b16 %v297
        %v411 = vunpack.c.h.b16 %v297
        %v412 = vunpack.c.l.b16 %v298
        %v413 = vunpack.c.h.b16 %v298
        %v414 = vunpack.c.l.b16 %v299
        %v415 = vunpack.c.h.b16 %v299
        %v416 = vunpack.c.l.b16 %v300
        %v417 = vunpack.c.h.b16 %v300
        %v418 = vunpack.c.l.b16 %v301
        %v419 = vunpack.c.h.b16 %v301
        %v420 = vunpack.c.l.b16 %v302
        %v421 = vunpack.c.h.b16 %v302
        %v422 = vunpack.c.l.b16 %v303
        %v423 = vunpack.c.h.b16 %v303
        %v424 = vunpack.c.l.b16 %v304
        %v425 = vunpack.c.h.b16 %v304
        %v426 = vunpack.c.l.b16 %v305
        %v427 = vunpack.c.h.b16 %v305
        %v428 = vunpack.c.l.b16 %v306
        %v429 = vunpack.c.h.b16 %v306
        %v430 = vunpack.c.l.b16 %v307
        %v431 = vunpack.c.h.b16 %v307
        %v432 = vunpack.c.l.b16 %v308
        %v433 = vunpack.c.h.b16 %v308
        %v434 = vunpack.c.l.b16 %v309
        %v435 = vunpack.c.h.b16 %v309
        %v436 = vunpack.c.l.b16 %v310
        %v437 = vunpack.c.h.b16 %v310
        %v438 = vunpack.c.l.b16 %v311
        %v439 = vunpack.c.h.b16 %v311
        %v440 = vunpack.c.l.b16 %v312
        %v441 = vunpack.c.h.b16 %v312
        %v442 = vunpack.c.l.b16 %v313
        %v443 = vunpack.c.h.b16 %v313
        %v444 = vpack.c.b16 %v384, %v380
        %v445 = vpack.c.b16 %v385, %v381
        %v446 = vpack.c.b16 %v386, %v382
        %v447 = vpack.c.b16 %v387, %v383
        %v448 = vpack.c.b16 %v392, %v388
        %v449 = vpack.c.b16 %v393, %v389
        %v450 = vpack.c.b16 %v394, %v390
        %v451 = vpack.c.b16 %v395, %v391
        %v452 = vpack.c.b16 %v400, %v396
        %v453 = vpack.c.b16 %v401, %v397
        %v454 = vpack.c.b16 %v402, %v398
        %v455 = vpack.c.b16 %v403, %v399
        %v456 = vpack.c.b16 %v408, %v404
        %v457 = vpack.c.b16 %v409, %v405
        %v458 = vpack.c.b16 %v410, %v406
        %v459 = vpack.c.b16 %v411, %v407
        %v460 = vpack.c.b16 %v416, %v412
        %v461 = vpack.c.b16 %v417, %v413
        %v462 = vpack.c.b16 %v418, %v414
        %v463 = vpack.c.b16 %v419, %v415
        %v464 = vpack.c.b16 %v424, %v420
        %v465 = vpack.c.b16 %v425, %v421
        %v466 = vpack.c.b16 %v426, %v422
        %v467 = vpack.c.b16 %v427, %v423
        %v468 = vpack.c.b16 %v432, %v428
        %v469 = vpack.c.b16 %v433, %v429
        %v470 = vpack.c.b16 %v434, %v430
        %v471 = vpack.c.b16 %v435, %v431
        %v472 = vpack.c.b16 %v440, %v436
        %v473 = vpack.c.b16 %v441, %v437
        %v474 = vpack.c.b16 %v442, %v438
        %v475 = vpack.c.b16 %v443, %v439
        %508 = vmatpush.bf16.msra.mxu0 %v472
        %509 = vmatpush.bf16.msra.mxu0 %v468
        %510 = vmatpush.bf16.msra.mxu0 %v464
        %511 = vmatpush.bf16.msra.mxu0 %v460
        %512 = vmatpush.bf16.msra.mxu0 %v456
        %513 = vmatpush.bf16.msra.mxu0 %v452
        %514 = vmatpush.bf16.msra.mxu0 %v448
        %515 = vmatpush.bf16.msra.mxu0 %v444
        %516 = vmatmul.bf16.gmra.mxu0 %v340
        %v517 = vpop.f32.mrf.mxu0
        %v518 = vadd.f32 %v316, %v517
        %v519 = vpop.f32.mrf.mxu0
        %v520 = vadd.f32 %v316, %v519
        %521 = vmatmul.bf16.gmra.mxu0 %v341
        %v522 = vpop.f32.mrf.mxu0
        %v523 = vadd.f32 %v316, %v522
        %v524 = vpop.f32.mrf.mxu0
        %v525 = vadd.f32 %v316, %v524
        %526 = vmatmul.bf16.gmra.mxu0 %v342
        %v527 = vpop.f32.mrf.mxu0
        %v528 = vadd.f32 %v316, %v527
        %v529 = vpop.f32.mrf.mxu0
        %v530 = vadd.f32 %v316, %v529
        %531 = vmatmul.bf16.gmra.mxu0 %v343
        %v532 = vpop.f32.mrf.mxu0
        %v533 = vadd.f32 %v316, %v532
        %v534 = vpop.f32.mrf.mxu0
        %v535 = vadd.f32 %v316, %v534
        %536 = vdwg.mxu0
        %537 = vmatpush.bf16.msra.mxu0 %v473
        %538 = vmatpush.bf16.msra.mxu0 %v469
        %539 = vmatpush.bf16.msra.mxu0 %v465
        %540 = vmatpush.bf16.msra.mxu0 %v461
        %541 = vmatpush.bf16.msra.mxu0 %v457
        %542 = vmatpush.bf16.msra.mxu0 %v453
        %543 = vmatpush.bf16.msra.mxu0 %v449
        %544 = vmatpush.bf16.msra.mxu0 %v445
        %545 = vmatmul.bf16.gmra.mxu0 %v340
        %v546 = vpop.f32.mrf.mxu0
        %v547 = vadd.f32 %v317, %v546
        %v548 = vpop.f32.mrf.mxu0
        %v549 = vadd.f32 %v317, %v548
        %550 = vmatmul.bf16.gmra.mxu0 %v341
        %v551 = vpop.f32.mrf.mxu0
        %v552 = vadd.f32 %v317, %v551
        %v553 = vpop.f32.mrf.mxu0
        %v554 = vadd.f32 %v317, %v553
        %555 = vmatmul.bf16.gmra.mxu0 %v342
        %v556 = vpop.f32.mrf.mxu0
        %v557 = vadd.f32 %v317, %v556
        %v558 = vpop.f32.mrf.mxu0
        %v559 = vadd.f32 %v317, %v558
        %560 = vmatmul.bf16.gmra.mxu0 %v343
        %v561 = vpop.f32.mrf.mxu0
        %v562 = vadd.f32 %v317, %v561
        %v563 = vpop.f32.mrf.mxu0
        %v564 = vadd.f32 %v317, %v563
        %565 = vdwg.mxu0
        %566 = vmatpush.bf16.msra.mxu0 %v474
        %567 = vmatpush.bf16.msra.mxu0 %v470
        %568 = vmatpush.bf16.msra.mxu0 %v466
        %569 = vmatpush.bf16.msra.mxu0 %v462
        %570 = vmatpush.bf16.msra.mxu0 %v458
        %571 = vmatpush.bf16.msra.mxu0 %v454
        %572 = vmatpush.bf16.msra.mxu0 %v450
        %573 = vmatpush.bf16.msra.mxu0 %v446
        %574 = vmatmul.bf16.gmra.mxu0 %v340
        %v575 = vpop.f32.mrf.mxu0
        %v576 = vadd.f32 %v318, %v575
        %v577 = vpop.f32.mrf.mxu0
        %v578 = vadd.f32 %v318, %v577
        %579 = vmatmul.bf16.gmra.mxu0 %v341
        %v580 = vpop.f32.mrf.mxu0
        %v581 = vadd.f32 %v318, %v580
        %v582 = vpop.f32.mrf.mxu0
        %v583 = vadd.f32 %v318, %v582
        %584 = vmatmul.bf16.gmra.mxu0 %v342
        %v585 = vpop.f32.mrf.mxu0
        %v586 = vadd.f32 %v318, %v585
        %v587 = vpop.f32.mrf.mxu0
        %v588 = vadd.f32 %v318, %v587
        %589 = vmatmul.bf16.gmra.mxu0 %v343
        %v590 = vpop.f32.mrf.mxu0
        %v591 = vadd.f32 %v318, %v590
        %v592 = vpop.f32.mrf.mxu0
        %v593 = vadd.f32 %v318, %v592
        %594 = vdwg.mxu0
        %595 = vmatpush.bf16.msra.mxu0 %v475
        %596 = vmatpush.bf16.msra.mxu0 %v471
        %597 = vmatpush.bf16.msra.mxu0 %v467
        %598 = vmatpush.bf16.msra.mxu0 %v463
        %599 = vmatpush.bf16.msra.mxu0 %v459
        %600 = vmatpush.bf16.msra.mxu0 %v455
        %601 = vmatpush.bf16.msra.mxu0 %v451
        %602 = vmatpush.bf16.msra.mxu0 %v447
        %603 = vmatmul.bf16.gmra.mxu0 %v340
        %v604 = vpop.f32.mrf.mxu0
        %v605 = vadd.f32 %v319, %v604
        %v606 = vpop.f32.mrf.mxu0
        %v607 = vadd.f32 %v319, %v606
        %608 = vmatmul.bf16.gmra.mxu0 %v341
        %v609 = vpop.f32.mrf.mxu0
        %v610 = vadd.f32 %v319, %v609
        %v611 = vpop.f32.mrf.mxu0
        %v612 = vadd.f32 %v319, %v611
        %613 = vmatmul.bf16.gmra.mxu0 %v342
        %v614 = vpop.f32.mrf.mxu0
        %v615 = vadd.f32 %v319, %v614
        %v616 = vpop.f32.mrf.mxu0
        %v617 = vadd.f32 %v319, %v616
        %618 = vmatmul.bf16.gmra.mxu0 %v343
        %v619 = vpop.f32.mrf.mxu0
        %v620 = vadd.f32 %v319, %v619
        %v621 = vpop.f32.mrf.mxu0
        %v622 = vadd.f32 %v319, %v621
        %623 = vdwg.mxu0
        %624 = vst [vmem:[#allocation4] sm:$0xff] %v518
        %625 = vst [vmem:[#allocation4 + $0x8] sm:$0xff] %v547
        %626 = vst [vmem:[#allocation4 + $0x10] sm:$0xff] %v576
        %627 = vst [vmem:[#allocation4 + $0x18] sm:$0xff] %v605
        %628 = vst [vmem:[#allocation4 + $0x20] sm:$0xff] %v520
        %629 = vst [vmem:[#allocation4 + $0x28] sm:$0xff] %v549
        %630 = vst [vmem:[#allocation4 + $0x30] sm:$0xff] %v578
        %631 = vst [vmem:[#allocation4 + $0x38] sm:$0xff] %v607
        %632 = vst [vmem:[#allocation4 + $0x40] sm:$0xff] %v523
        %633 = vst [vmem:[#allocation4 + $0x48] sm:$0xff] %v552
        %634 = vst [vmem:[#allocation4 + $0x50] sm:$0xff] %v581
        %635 = vst [vmem:[#allocation4 + $0x58] sm:$0xff] %v610
        %636 = vst [vmem:[#allocation4 + $0x60] sm:$0xff] %v525
        %637 = vst [vmem:[#allocation4 + $0x68] sm:$0xff] %v554
        %638 = vst [vmem:[#allocation4 + $0x70] sm:$0xff] %v583
        %639 = vst [vmem:[#allocation4 + $0x78] sm:$0xff] %v612
        %640 = vst [vmem:[#allocation4 + $0x80] sm:$0xff] %v528
        %641 = vst [vmem:[#allocation4 + $0x88] sm:$0xff] %v557
        %642 = vst [vmem:[#allocation4 + $0x90] sm:$0xff] %v586
        %643 = vst [vmem:[#allocation4 + $0x98] sm:$0xff] %v615
        %644 = vst [vmem:[#allocation4 + $0xa0] sm:$0xff] %v530
        %645 = vst [vmem:[#allocation4 + $0xa8] sm:$0xff] %v559
        %646 = vst [vmem:[#allocation4 + $0xb0] sm:$0xff] %v588
        %647 = vst [vmem:[#allocation4 + $0xb8] sm:$0xff] %v617
        %648 = vst [vmem:[#allocation4 + $0xc0] sm:$0xff] %v533
        %649 = vst [vmem:[#allocation4 + $0xc8] sm:$0xff] %v562
        %650 = vst [vmem:[#allocation4 + $0xd0] sm:$0xff] %v591
        %651 = vst [vmem:[#allocation4 + $0xd8] sm:$0xff] %v620
        %652 = vst [vmem:[#allocation4 + $0xe0] sm:$0xff] %v535
        %653 = vst [vmem:[#allocation4 + $0xe8] sm:$0xff] %v564
        %654 = vst [vmem:[#allocation4 + $0xf0] sm:$0xff] %v593
        %655 = vst [vmem:[#allocation4 + $0xf8] sm:$0xff] %v622
        %v656 = vld [vmem:[#allocation10] sm:$0xff]
        %v657 = vld [vmem:[#allocation10 + $0x8] sm:$0xff]
        %v658 = vld [vmem:[#allocation10 + $0x10] sm:$0xff]
        %v659 = vld [vmem:[#allocation10 + $0x18] sm:$0xff]
        %v660 = vld [vmem:[#allocation10 + $0x20] sm:$0xff]
        %v661 = vld [vmem:[#allocation10 + $0x28] sm:$0xff]
        %v662 = vld [vmem:[#allocation10 + $0x30] sm:$0xff]
        %v663 = vld [vmem:[#allocation10 + $0x38] sm:$0xff]
        %v664 = vld [vmem:[#allocation10 + $0x40] sm:$0xff]
        %v665 = vld [vmem:[#allocation10 + $0x48] sm:$0xff]
        %v666 = vld [vmem:[#allocation10 + $0x50] sm:$0xff]
        %v667 = vld [vmem:[#allocation10 + $0x58] sm:$0xff]
        %v668 = vld [vmem:[#allocation10 + $0x60] sm:$0xff]
        %v669 = vld [vmem:[#allocation10 + $0x68] sm:$0xff]
        %v670 = vld [vmem:[#allocation10 + $0x70] sm:$0xff]
        %v671 = vld [vmem:[#allocation10 + $0x78] sm:$0xff]
        %v672 = vld [vmem:[#allocation10 + $0x80] sm:$0xff]
        %v673 = vld [vmem:[#allocation10 + $0x88] sm:$0xff]
        %v674 = vld [vmem:[#allocation10 + $0x90] sm:$0xff]
        %v675 = vld [vmem:[#allocation10 + $0x98] sm:$0xff]
        %v676 = vld [vmem:[#allocation10 + $0xa0] sm:$0xff]
        %v677 = vld [vmem:[#allocation10 + $0xa8] sm:$0xff]
        %v678 = vld [vmem:[#allocation10 + $0xb0] sm:$0xff]
        %v679 = vld [vmem:[#allocation10 + $0xb8] sm:$0xff]
        %v680 = vld [vmem:[#allocation10 + $0xc0] sm:$0xff]
        %v681 = vld [vmem:[#allocation10 + $0xc8] sm:$0xff]
        %v682 = vld [vmem:[#allocation10 + $0xd0] sm:$0xff]
        %v683 = vld [vmem:[#allocation10 + $0xd8] sm:$0xff]
        %v684 = vld [vmem:[#allocation10 + $0xe0] sm:$0xff]
        %v685 = vld [vmem:[#allocation10 + $0xe8] sm:$0xff]
        %v686 = vld [vmem:[#allocation10 + $0xf0] sm:$0xff]
        %v687 = vld [vmem:[#allocation10 + $0xf8] sm:$0xff]
        %v688 = vld [vmem:[#allocation2] sm:$0xff]
        %v689 = vld [vmem:[#allocation3] sm:$0xff]
        %v690 = vld [vmem:[#allocation4] sm:$0xff]
        %v691 = vld [vmem:[#allocation4 + $0x8] sm:$0xff]
        %v692 = vld [vmem:[#allocation4 + $0x10] sm:$0xff]
        %v693 = vld [vmem:[#allocation4 + $0x18] sm:$0xff]
        %v694 = vpack.c.bf16 %v688, %v688
        %v727 = vunpack.c.l.b16 %v656
        %v728 = vunpack.c.h.b16 %v656
        %v729 = vunpack.c.l.b16 %v657
        %v730 = vunpack.c.h.b16 %v657
        %v731 = vunpack.c.l.b16 %v658
        %v732 = vunpack.c.h.b16 %v658
        %v733 = vunpack.c.l.b16 %v659
        %v734 = vunpack.c.h.b16 %v659
        %v735 = vunpack.c.l.b16 %v660
        %v736 = vunpack.c.h.b16 %v660
        %v737 = vunpack.c.l.b16 %v661
        %v738 = vunpack.c.h.b16 %v661
        %v739 = vunpack.c.l.b16 %v662
        %v740 = vunpack.c.h.b16 %v662
        %v741 = vunpack.c.l.b16 %v663
        %v742 = vunpack.c.h.b16 %v663
        %v743 = vunpack.c.l.b16 %v664
        %v744 = vunpack.c.h.b16 %v664
        %v745 = vunpack.c.l.b16 %v665
        %v746 = vunpack.c.h.b16 %v665
        %v747 = vunpack.c.l.b16 %v666
        %v748 = vunpack.c.h.b16 %v666
        %v749 = vunpack.c.l.b16 %v667
        %v750 = vunpack.c.h.b16 %v667
        %v751 = vunpack.c.l.b16 %v668
        %v752 = vunpack.c.h.b16 %v668
        %v753 = vunpack.c.l.b16 %v669
        %v754 = vunpack.c.h.b16 %v669
        %v755 = vunpack.c.l.b16 %v670
        %v756 = vunpack.c.h.b16 %v670
        %v757 = vunpack.c.l.b16 %v671
        %v758 = vunpack.c.h.b16 %v671
        %v759 = vunpack.c.l.b16 %v672
        %v760 = vunpack.c.h.b16 %v672
        %v761 = vunpack.c.l.b16 %v673
        %v762 = vunpack.c.h.b16 %v673
        %v763 = vunpack.c.l.b16 %v674
        %v764 = vunpack.c.h.b16 %v674
        %v765 = vunpack.c.l.b16 %v675
        %v766 = vunpack.c.h.b16 %v675
        %v767 = vunpack.c.l.b16 %v676
        %v768 = vunpack.c.h.b16 %v676
        %v769 = vunpack.c.l.b16 %v677
        %v770 = vunpack.c.h.b16 %v677
        %v771 = vunpack.c.l.b16 %v678
        %v772 = vunpack.c.h.b16 %v678
        %v773 = vunpack.c.l.b16 %v679
        %v774 = vunpack.c.h.b16 %v679
        %v775 = vunpack.c.l.b16 %v680
        %v776 = vunpack.c.h.b16 %v680
        %v777 = vunpack.c.l.b16 %v681
        %v778 = vunpack.c.h.b16 %v681
        %v779 = vunpack.c.l.b16 %v682
        %v780 = vunpack.c.h.b16 %v682
        %v781 = vunpack.c.l.b16 %v683
        %v782 = vunpack.c.h.b16 %v683
        %v783 = vunpack.c.l.b16 %v684
        %v784 = vunpack.c.h.b16 %v684
        %v785 = vunpack.c.l.b16 %v685
        %v786 = vunpack.c.h.b16 %v685
        %v787 = vunpack.c.l.b16 %v686
        %v788 = vunpack.c.h.b16 %v686
        %v789 = vunpack.c.l.b16 %v687
        %v790 = vunpack.c.h.b16 %v687
        %v791 = vpack.c.b16 %v731, %v727
        %v792 = vpack.c.b16 %v732, %v728
        %v793 = vpack.c.b16 %v733, %v729
        %v794 = vpack.c.b16 %v734, %v730
        %v795 = vpack.c.b16 %v739, %v735
        %v796 = vpack.c.b16 %v740, %v736
        %v797 = vpack.c.b16 %v741, %v737
        %v798 = vpack.c.b16 %v742, %v738
        %v799 = vpack.c.b16 %v747, %v743
        %v800 = vpack.c.b16 %v748, %v744
        %v801 = vpack.c.b16 %v749, %v745
        %v802 = vpack.c.b16 %v750, %v746
        %v803 = vpack.c.b16 %v755, %v751
        %v804 = vpack.c.b16 %v756, %v752
        %v805 = vpack.c.b16 %v757, %v753
        %v806 = vpack.c.b16 %v758, %v754
        %v807 = vpack.c.b16 %v763, %v759
        %v808 = vpack.c.b16 %v764, %v760
        %v809 = vpack.c.b16 %v765, %v761
        %v810 = vpack.c.b16 %v766, %v762
        %v811 = vpack.c.b16 %v771, %v767
        %v812 = vpack.c.b16 %v772, %v768
        %v813 = vpack.c.b16 %v773, %v769
        %v814 = vpack.c.b16 %v774, %v770
        %v815 = vpack.c.b16 %v779, %v775
        %v816 = vpack.c.b16 %v780, %v776
        %v817 = vpack.c.b16 %v781, %v777
        %v818 = vpack.c.b16 %v782, %v778
        %v819 = vpack.c.b16 %v787, %v783
        %v820 = vpack.c.b16 %v788, %v784
        %v821 = vpack.c.b16 %v789, %v785
        %v822 = vpack.c.b16 %v790, %v786
        %855 = vmatpush.bf16.msra.mxu0 %v819
        %856 = vmatpush.bf16.msra.mxu0 %v815
        %857 = vmatpush.bf16.msra.mxu0 %v811
        %858 = vmatpush.bf16.msra.mxu0 %v807
        %859 = vmatpush.bf16.msra.mxu0 %v803
        %860 = vmatpush.bf16.msra.mxu0 %v799
        %861 = vmatpush.bf16.msra.mxu0 %v795
        %862 = vmatpush.bf16.msra.mxu0 %v791
        %863 = vmatmul.bf16.gmra.mxu0 %v694
        %v864 = vpop.f32.mrf.mxu0
        %v865 = vadd.f32 0.0, %v864
        %v866 = vpop.f32.mrf.mxu0
        %867 = vdwg.mxu0
        %868 = vmatpush.bf16.msra.mxu0 %v820
        %869 = vmatpush.bf16.msra.mxu0 %v816
        %870 = vmatpush.bf16.msra.mxu0 %v812
        %871 = vmatpush.bf16.msra.mxu0 %v808
        %872 = vmatpush.bf16.msra.mxu0 %v804
        %873 = vmatpush.bf16.msra.mxu0 %v800
        %874 = vmatpush.bf16.msra.mxu0 %v796
        %875 = vmatpush.bf16.msra.mxu0 %v792
        %876 = vmatmul.bf16.gmra.mxu0 %v694
        %v877 = vpop.f32.mrf.mxu0
        %v878 = vadd.f32 0.0, %v877
        %v879 = vpop.f32.mrf.mxu0
        %880 = vdwg.mxu0
        %881 = vmatpush.bf16.msra.mxu0 %v821
        %882 = vmatpush.bf16.msra.mxu0 %v817
        %883 = vmatpush.bf16.msra.mxu0 %v813
        %884 = vmatpush.bf16.msra.mxu0 %v809
        %885 = vmatpush.bf16.msra.mxu0 %v805
        %886 = vmatpush.bf16.msra.mxu0 %v801
        %887 = vmatpush.bf16.msra.mxu0 %v797
        %888 = vmatpush.bf16.msra.mxu0 %v793
        %889 = vmatmul.bf16.gmra.mxu0 %v694
        %v890 = vpop.f32.mrf.mxu0
        %v891 = vadd.f32 0.0, %v890
        %v892 = vpop.f32.mrf.mxu0
        %893 = vdwg.mxu0
        %894 = vmatpush.bf16.msra.mxu0 %v822
        %895 = vmatpush.bf16.msra.mxu0 %v818
        %896 = vmatpush.bf16.msra.mxu0 %v814
        %897 = vmatpush.bf16.msra.mxu0 %v810
        %898 = vmatpush.bf16.msra.mxu0 %v806
        %899 = vmatpush.bf16.msra.mxu0 %v802
        %900 = vmatpush.bf16.msra.mxu0 %v798
        %901 = vmatpush.bf16.msra.mxu0 %v794
        %902 = vmatmul.bf16.gmra.mxu0 %v694
        %v903 = vpop.f32.mrf.mxu0
        %v904 = vadd.f32 0.0, %v903
        %v905 = vpop.f32.mrf.mxu0
        %906 = vdwg.mxu0
        %v907 = vadd.f32 %v690, %v865
        %v908 = vadd.f32 %v691, %v878
        %v909 = vadd.f32 %v692, %v891
        %v910 = vadd.f32 %v693, %v904
        %v911 = vxor.u32 %v907, 2147483648
        %v912 = vmul.f32 %v911, 1.442695
        %v913 = vpow.pop %v912
        %v914 = vadd.f32 %v913, 1.0
        %v915 = vrcp.pop %v914
        %v916 = vmul.f32 %v914, %v915
        %v917 = vsub.f32 1.0, %v916
        %v918 = vmul.f32 %v915, %v917
        %v919 = vadd.f32 %v915, %v918
        %vm920 = vweird.f32 %v914
        %vm921 = vweird.f32 %v915
        %vm922 = vmor %vm920, %vm921
        %v923 = vsel %vm922, %v915, %v919
        %v924 = vand.u32 2147483647, %v914
        %vm925 = vcmp.eq.f32.partialorder %v924, 8.507059e+37
        %v926 = vand.u32 %v914, 2147483648
        %v927 = vor.u32 1.1754944e-38, %v926
        %v928 = vsel %vm925, %v927, %v923
        %v929 = vmul.f32 1.0, %v928
        %v930 = vxor.u32 %v908, 2147483648
        %v931 = vmul.f32 %v930, 1.442695
        %v932 = vpow.pop %v931
        %v933 = vadd.f32 %v932, 1.0
        %v934 = vrcp.pop %v933
        %v935 = vmul.f32 %v933, %v934
        %v936 = vsub.f32 1.0, %v935
        %v937 = vmul.f32 %v934, %v936
        %v938 = vadd.f32 %v934, %v937
        %vm939 = vweird.f32 %v933
        %vm940 = vweird.f32 %v934
        %vm941 = vmor %vm939, %vm940
        %v942 = vsel %vm941, %v934, %v938
        %v943 = vand.u32 2147483647, %v933
        %vm944 = vcmp.eq.f32.partialorder %v943, 8.507059e+37
        %v945 = vand.u32 %v933, 2147483648
        %v946 = vor.u32 1.1754944e-38, %v945
        %v947 = vsel %vm944, %v946, %v942
        %v948 = vmul.f32 1.0, %v947
        %v949 = vtanh.pop %v909
        %v950 = vxor.u32 %v910, 2147483648
        %v951 = vmul.f32 %v950, 1.442695
        %v952 = vpow.pop %v951
        %v953 = vadd.f32 %v952, 1.0
        %v954 = vrcp.pop %v953
        %v955 = vmul.f32 %v953, %v954
        %v956 = vsub.f32 1.0, %v955
        %v957 = vmul.f32 %v954, %v956
        %v958 = vadd.f32 %v954, %v957
        %vm959 = vweird.f32 %v953
        %vm960 = vweird.f32 %v954
        %vm961 = vmor %vm959, %vm960
        %v962 = vsel %vm961, %v954, %v958
        %v963 = vand.u32 2147483647, %v953
        %vm964 = vcmp.eq.f32.partialorder %v963, 8.507059e+37
        %v965 = vand.u32 %v953, 2147483648
        %v966 = vor.u32 1.1754944e-38, %v965
        %v967 = vsel %vm964, %v966, %v962
        %v968 = vmul.f32 1.0, %v967
        %v969 = vmul.f32 %v948, %v689
        %v970 = vmul.f32 %v929, %v949
        %v971 = vadd.f32 %v969, %v970
        %v972 = vtanh.pop %v971
        %v973 = vmul.f32 %v968, %v972
        %974 = vst [vmem:[%s265] sm:$0xff] %v973
        %s975 = scalar_lea.vmem [#allocation4], 32
        %v976 = vld [vmem:[%s975] sm:$0xff]
        %v977 = vld [vmem:[%s975 + $0x8] sm:$0xff]
        %v978 = vld [vmem:[%s975 + $0x10] sm:$0xff]
        %v979 = vld [vmem:[%s975 + $0x18] sm:$0xff]
        %v980 = vpack.c.bf16 %v973, %v973
        %981 = vmatpush.bf16.msra.mxu0 %v819
        %982 = vmatpush.bf16.msra.mxu0 %v815
        %983 = vmatpush.bf16.msra.mxu0 %v811
        %984 = vmatpush.bf16.msra.mxu0 %v807
        %985 = vmatpush.bf16.msra.mxu0 %v803
        %986 = vmatpush.bf16.msra.mxu0 %v799
        %987 = vmatpush.bf16.msra.mxu0 %v795
        %988 = vmatpush.bf16.msra.mxu0 %v791
        %989 = vmatmul.bf16.gmra.mxu0 %v980
        %v990 = vpop.f32.mrf.mxu0
        %v991 = vadd.f32 0.0, %v990
        %v992 = vpop.f32.mrf.mxu0
        %993 = vdwg.mxu0
        %994 = vmatpush.bf16.msra.mxu0 %v820
        %995 = vmatpush.bf16.msra.mxu0 %v816
        %996 = vmatpush.bf16.msra.mxu0 %v812
        %997 = vmatpush.bf16.msra.mxu0 %v808
        %998 = vmatpush.bf16.msra.mxu0 %v804
        %999 = vmatpush.bf16.msra.mxu0 %v800
        %1000 = vmatpush.bf16.msra.mxu0 %v796
        %1001 = vmatpush.bf16.msra.mxu0 %v792
        %1002 = vmatmul.bf16.gmra.mxu0 %v980
        %v1003 = vpop.f32.mrf.mxu0
        %v1004 = vadd.f32 0.0, %v1003
        %v1005 = vpop.f32.mrf.mxu0
        %1006 = vdwg.mxu0
        %1007 = vmatpush.bf16.msra.mxu0 %v821
        %1008 = vmatpush.bf16.msra.mxu0 %v817
        %1009 = vmatpush.bf16.msra.mxu0 %v813
        %1010 = vmatpush.bf16.msra.mxu0 %v809
        %1011 = vmatpush.bf16.msra.mxu0 %v805
        %1012 = vmatpush.bf16.msra.mxu0 %v801
        %1013 = vmatpush.bf16.msra.mxu0 %v797
        %1014 = vmatpush.bf16.msra.mxu0 %v793
        %1015 = vmatmul.bf16.gmra.mxu0 %v980
        %v1016 = vpop.f32.mrf.mxu0
        %v1017 = vadd.f32 0.0, %v1016
        %v1018 = vpop.f32.mrf.mxu0
        %1019 = vdwg.mxu0
        %1020 = vmatpush.bf16.msra.mxu0 %v822
        %1021 = vmatpush.bf16.msra.mxu0 %v818
        %1022 = vmatpush.bf16.msra.mxu0 %v814
        %1023 = vmatpush.bf16.msra.mxu0 %v810
        %1024 = vmatpush.bf16.msra.mxu0 %v806
        %1025 = vmatpush.bf16.msra.mxu0 %v802
        %1026 = vmatpush.bf16.msra.mxu0 %v798
        %1027 = vmatpush.bf16.msra.mxu0 %v794
        %1028 = vmatmul.bf16.gmra.mxu0 %v980
        %v1029 = vpop.f32.mrf.mxu0
        %v1030 = vadd.f32 0.0, %v1029
        %v1031 = vpop.f32.mrf.mxu0
        %1032 = vdwg.mxu0
        %v1033 = vadd.f32 %v976, %v991
        %v1034 = vadd.f32 %v977, %v1004
        %v1035 = vadd.f32 %v978, %v1017
        %v1036 = vadd.f32 %v979, %v1030
        %v1037 = vxor.u32 %v1033, 2147483648
        %v1038 = vmul.f32 %v1037, 1.442695
        %v1039 = vpow.pop %v1038
        %v1040 = vadd.f32 %v1039, 1.0
        %v1041 = vrcp.pop %v1040
        %v1042 = vmul.f32 %v1040, %v1041
        %v1043 = vsub.f32 1.0, %v1042
        %v1044 = vmul.f32 %v1041, %v1043
        %v1045 = vadd.f32 %v1041, %v1044
        %vm1046 = vweird.f32 %v1040
        %vm1047 = vweird.f32 %v1041
        %vm1048 = vmor %vm1046, %vm1047
        %v1049 = vsel %vm1048, %v1041, %v1045
        %v1050 = vand.u32 2147483647, %v1040
        %vm1051 = vcmp.eq.f32.partialorder %v1050, 8.507059e+37
        %v1052 = vand.u32 %v1040, 2147483648
        %v1053 = vor.u32 1.1754944e-38, %v1052
        %v1054 = vsel %vm1051, %v1053, %v1049
        %v1055 = vmul.f32 1.0, %v1054
        %v1056 = vxor.u32 %v1034, 2147483648
        %v1057 = vmul.f32 %v1056, 1.442695
        %v1058 = vpow.pop %v1057
        %v1059 = vadd.f32 %v1058, 1.0
        %v1060 = vrcp.pop %v1059
        %v1061 = vmul.f32 %v1059, %v1060
        %v1062 = vsub.f32 1.0, %v1061
        %v1063 = vmul.f32 %v1060, %v1062
        %v1064 = vadd.f32 %v1060, %v1063
        %vm1065 = vweird.f32 %v1059
        %vm1066 = vweird.f32 %v1060
        %vm1067 = vmor %vm1065, %vm1066
        %v1068 = vsel %vm1067, %v1060, %v1064
        %v1069 = vand.u32 2147483647, %v1059
        %vm1070 = vcmp.eq.f32.partialorder %v1069, 8.507059e+37
        %v1071 = vand.u32 %v1059, 2147483648
        %v1072 = vor.u32 1.1754944e-38, %v1071
        %v1073 = vsel %vm1070, %v1072, %v1068
        %v1074 = vmul.f32 1.0, %v1073
        %v1075 = vtanh.pop %v1035
        %v1076 = vxor.u32 %v1036, 2147483648
        %v1077 = vmul.f32 %v1076, 1.442695
        %v1078 = vpow.pop %v1077
        %v1079 = vadd.f32 %v1078, 1.0
        %v1080 = vrcp.pop %v1079
        %v1081 = vmul.f32 %v1079, %v1080
        %v1082 = vsub.f32 1.0, %v1081
        %v1083 = vmul.f32 %v1080, %v1082
        %v1084 = vadd.f32 %v1080, %v1083
        %vm1085 = vweird.f32 %v1079
        %vm1086 = vweird.f32 %v1080
        %vm1087 = vmor %vm1085, %vm1086
        %v1088 = vsel %vm1087, %v1080, %v1084
        %v1089 = vand.u32 2147483647, %v1079
        %vm1090 = vcmp.eq.f32.partialorder %v1089, 8.507059e+37
        %v1091 = vand.u32 %v1079, 2147483648
        %v1092 = vor.u32 1.1754944e-38, %v1091
        %v1093 = vsel %vm1090, %v1092, %v1088
        %v1094 = vmul.f32 1.0, %v1093
        %v1095 = vmul.f32 %v1074, %v971
        %v1096 = vmul.f32 %v1055, %v1075
        %v1097 = vadd.f32 %v1095, %v1096
        %v1098 = vtanh.pop %v1097
        %v1099 = vmul.f32 %v1094, %v1098
        %s1100 = scalar_lea.vmem %s265, 8 [#allocation13]
        %1101 = vst [vmem:[%s1100] sm:$0xff] %v1099
        %s1102 = scalar_lea.vmem [#allocation4], 64
        %v1103 = vld [vmem:[%s1102] sm:$0xff]
        %v1104 = vld [vmem:[%s1102 + $0x8] sm:$0xff]
        %v1105 = vld [vmem:[%s1102 + $0x10] sm:$0xff]
        %v1106 = vld [vmem:[%s1102 + $0x18] sm:$0xff]
        %v1107 = vpack.c.bf16 %v1099, %v1099
        %1108 = vmatpush.bf16.msra.mxu0 %v819
        %1109 = vmatpush.bf16.msra.mxu0 %v815
        %1110 = vmatpush.bf16.msra.mxu0 %v811
        %1111 = vmatpush.bf16.msra.mxu0 %v807
        %1112 = vmatpush.bf16.msra.mxu0 %v803
        %1113 = vmatpush.bf16.msra.mxu0 %v799
        %1114 = vmatpush.bf16.msra.mxu0 %v795
        %1115 = vmatpush.bf16.msra.mxu0 %v791
        %1116 = vmatmul.bf16.gmra.mxu0 %v1107
        %v1117 = vpop.f32.mrf.mxu0
        %v1118 = vadd.f32 0.0, %v1117
        %v1119 = vpop.f32.mrf.mxu0
        %1120 = vdwg.mxu0
        %1121 = vmatpush.bf16.msra.mxu0 %v820
        %1122 = vmatpush.bf16.msra.mxu0 %v816
        %1123 = vmatpush.bf16.msra.mxu0 %v812
        %1124 = vmatpush.bf16.msra.mxu0 %v808
        %1125 = vmatpush.bf16.msra.mxu0 %v804
        %1126 = vmatpush.bf16.msra.mxu0 %v800
        %1127 = vmatpush.bf16.msra.mxu0 %v796
        %1128 = vmatpush.bf16.msra.mxu0 %v792
        %1129 = vmatmul.bf16.gmra.mxu0 %v1107
        %v1130 = vpop.f32.mrf.mxu0
        %v1131 = vadd.f32 0.0, %v1130
        %v1132 = vpop.f32.mrf.mxu0
        %1133 = vdwg.mxu0
        %1134 = vmatpush.bf16.msra.mxu0 %v821
        %1135 = vmatpush.bf16.msra.mxu0 %v817
        %1136 = vmatpush.bf16.msra.mxu0 %v813
        %1137 = vmatpush.bf16.msra.mxu0 %v809
        %1138 = vmatpush.bf16.msra.mxu0 %v805
        %1139 = vmatpush.bf16.msra.mxu0 %v801
        %1140 = vmatpush.bf16.msra.mxu0 %v797
        %1141 = vmatpush.bf16.msra.mxu0 %v793
        %1142 = vmatmul.bf16.gmra.mxu0 %v1107
        %v1143 = vpop.f32.mrf.mxu0
        %v1144 = vadd.f32 0.0, %v1143
        %v1145 = vpop.f32.mrf.mxu0
        %1146 = vdwg.mxu0
        %1147 = vmatpush.bf16.msra.mxu0 %v822
        %1148 = vmatpush.bf16.msra.mxu0 %v818
        %1149 = vmatpush.bf16.msra.mxu0 %v814
        %1150 = vmatpush.bf16.msra.mxu0 %v810
        %1151 = vmatpush.bf16.msra.mxu0 %v806
        %1152 = vmatpush.bf16.msra.mxu0 %v802
        %1153 = vmatpush.bf16.msra.mxu0 %v798
        %1154 = vmatpush.bf16.msra.mxu0 %v794
        %1155 = vmatmul.bf16.gmra.mxu0 %v1107
        %v1156 = vpop.f32.mrf.mxu0
        %v1157 = vadd.f32 0.0, %v1156
        %v1158 = vpop.f32.mrf.mxu0
        %1159 = vdwg.mxu0
        %v1160 = vadd.f32 %v1103, %v1118
        %v1161 = vadd.f32 %v1104, %v1131
        %v1162 = vadd.f32 %v1105, %v1144
        %v1163 = vadd.f32 %v1106, %v1157
        %v1164 = vxor.u32 %v1160, 2147483648
        %v1165 = vmul.f32 %v1164, 1.442695
        %v1166 = vpow.pop %v1165
        %v1167 = vadd.f32 %v1166, 1.0
        %v1168 = vrcp.pop %v1167
        %v1169 = vmul.f32 %v1167, %v1168
        %v1170 = vsub.f32 1.0, %v1169
        %v1171 = vmul.f32 %v1168, %v1170
        %v1172 = vadd.f32 %v1168, %v1171
        %vm1173 = vweird.f32 %v1167
        %vm1174 = vweird.f32 %v1168
        %vm1175 = vmor %vm1173, %vm1174
        %v1176 = vsel %vm1175, %v1168, %v1172
        %v1177 = vand.u32 2147483647, %v1167
        %vm1178 = vcmp.eq.f32.partialorder %v1177, 8.507059e+37
        %v1179 = vand.u32 %v1167, 2147483648
        %v1180 = vor.u32 1.1754944e-38, %v1179
        %v1181 = vsel %vm1178, %v1180, %v1176
        %v1182 = vmul.f32 1.0, %v1181
        %v1183 = vxor.u32 %v1161, 2147483648
        %v1184 = vmul.f32 %v1183, 1.442695
        %v1185 = vpow.pop %v1184
        %v1186 = vadd.f32 %v1185, 1.0
        %v1187 = vrcp.pop %v1186
        %v1188 = vmul.f32 %v1186, %v1187
        %v1189 = vsub.f32 1.0, %v1188
        %v1190 = vmul.f32 %v1187, %v1189
        %v1191 = vadd.f32 %v1187, %v1190
        %vm1192 = vweird.f32 %v1186
        %vm1193 = vweird.f32 %v1187
        %vm1194 = vmor %vm1192, %vm1193
        %v1195 = vsel %vm1194, %v1187, %v1191
        %v1196 = vand.u32 2147483647, %v1186
        %vm1197 = vcmp.eq.f32.partialorder %v1196, 8.507059e+37
        %v1198 = vand.u32 %v1186, 2147483648
        %v1199 = vor.u32 1.1754944e-38, %v1198
        %v1200 = vsel %vm1197, %v1199, %v1195
        %v1201 = vmul.f32 1.0, %v1200
        %v1202 = vtanh.pop %v1162
        %v1203 = vxor.u32 %v1163, 2147483648
        %v1204 = vmul.f32 %v1203, 1.442695
        %v1205 = vpow.pop %v1204
        %v1206 = vadd.f32 %v1205, 1.0
        %v1207 = vrcp.pop %v1206
        %v1208 = vmul.f32 %v1206, %v1207
        %v1209 = vsub.f32 1.0, %v1208
        %v1210 = vmul.f32 %v1207, %v1209
        %v1211 = vadd.f32 %v1207, %v1210
        %vm1212 = vweird.f32 %v1206
        %vm1213 = vweird.f32 %v1207
        %vm1214 = vmor %vm1212, %vm1213
        %v1215 = vsel %vm1214, %v1207, %v1211
        %v1216 = vand.u32 2147483647, %v1206
        %vm1217 = vcmp.eq.f32.partialorder %v1216, 8.507059e+37
        %v1218 = vand.u32 %v1206, 2147483648
        %v1219 = vor.u32 1.1754944e-38, %v1218
        %v1220 = vsel %vm1217, %v1219, %v1215
        %v1221 = vmul.f32 1.0, %v1220
        %v1222 = vmul.f32 %v1201, %v1097
        %v1223 = vmul.f32 %v1182, %v1202
        %v1224 = vadd.f32 %v1222, %v1223
        %v1225 = vtanh.pop %v1224
        %v1226 = vmul.f32 %v1221, %v1225
        %s1227 = scalar_lea.vmem %s265, 16 [#allocation13]
        %1228 = vst [vmem:[%s1227] sm:$0xff] %v1226
        %s1229 = scalar_lea.vmem [#allocation4], 96
        %v1230 = vld [vmem:[%s1229] sm:$0xff]
        %v1231 = vld [vmem:[%s1229 + $0x8] sm:$0xff]
        %v1232 = vld [vmem:[%s1229 + $0x10] sm:$0xff]
        %v1233 = vld [vmem:[%s1229 + $0x18] sm:$0xff]
        %v1234 = vpack.c.bf16 %v1226, %v1226
        %1235 = vmatpush.bf16.msra.mxu0 %v819
        %1236 = vmatpush.bf16.msra.mxu0 %v815
        %1237 = vmatpush.bf16.msra.mxu0 %v811
        %1238 = vmatpush.bf16.msra.mxu0 %v807
        %1239 = vmatpush.bf16.msra.mxu0 %v803
        %1240 = vmatpush.bf16.msra.mxu0 %v799
        %1241 = vmatpush.bf16.msra.mxu0 %v795
        %1242 = vmatpush.bf16.msra.mxu0 %v791
        %1243 = vmatmul.bf16.gmra.mxu0 %v1234
        %v1244 = vpop.f32.mrf.mxu0
        %v1245 = vadd.f32 0.0, %v1244
        %v1246 = vpop.f32.mrf.mxu0
        %1247 = vdwg.mxu0
        %1248 = vmatpush.bf16.msra.mxu0 %v820
        %1249 = vmatpush.bf16.msra.mxu0 %v816
        %1250 = vmatpush.bf16.msra.mxu0 %v812
        %1251 = vmatpush.bf16.msra.mxu0 %v808
        %1252 = vmatpush.bf16.msra.mxu0 %v804
        %1253 = vmatpush.bf16.msra.mxu0 %v800
        %1254 = vmatpush.bf16.msra.mxu0 %v796
        %1255 = vmatpush.bf16.msra.mxu0 %v792
        %1256 = vmatmul.bf16.gmra.mxu0 %v1234
        %v1257 = vpop.f32.mrf.mxu0
        %v1258 = vadd.f32 0.0, %v1257
        %v1259 = vpop.f32.mrf.mxu0
        %1260 = vdwg.mxu0
        %1261 = vmatpush.bf16.msra.mxu0 %v821
        %1262 = vmatpush.bf16.msra.mxu0 %v817
        %1263 = vmatpush.bf16.msra.mxu0 %v813
        %1264 = vmatpush.bf16.msra.mxu0 %v809
        %1265 = vmatpush.bf16.msra.mxu0 %v805
        %1266 = vmatpush.bf16.msra.mxu0 %v801
        %1267 = vmatpush.bf16.msra.mxu0 %v797
        %1268 = vmatpush.bf16.msra.mxu0 %v793
        %1269 = vmatmul.bf16.gmra.mxu0 %v1234
        %v1270 = vpop.f32.mrf.mxu0
        %v1271 = vadd.f32 0.0, %v1270
        %v1272 = vpop.f32.mrf.mxu0
        %1273 = vdwg.mxu0
        %1274 = vmatpush.bf16.msra.mxu0 %v822
        %1275 = vmatpush.bf16.msra.mxu0 %v818
        %1276 = vmatpush.bf16.msra.mxu0 %v814
        %1277 = vmatpush.bf16.msra.mxu0 %v810
        %1278 = vmatpush.bf16.msra.mxu0 %v806
        %1279 = vmatpush.bf16.msra.mxu0 %v802
        %1280 = vmatpush.bf16.msra.mxu0 %v798
        %1281 = vmatpush.bf16.msra.mxu0 %v794
        %1282 = vmatmul.bf16.gmra.mxu0 %v1234
        %v1283 = vpop.f32.mrf.mxu0
        %v1284 = vadd.f32 0.0, %v1283
        %v1285 = vpop.f32.mrf.mxu0
        %1286 = vdwg.mxu0
        %v1287 = vadd.f32 %v1230, %v1245
        %v1288 = vadd.f32 %v1231, %v1258
        %v1289 = vadd.f32 %v1232, %v1271
        %v1290 = vadd.f32 %v1233, %v1284
        %v1291 = vxor.u32 %v1287, 2147483648
        %v1292 = vmul.f32 %v1291, 1.442695
        %v1293 = vpow.pop %v1292
        %v1294 = vadd.f32 %v1293, 1.0
        %v1295 = vrcp.pop %v1294
        %v1296 = vmul.f32 %v1294, %v1295
        %v1297 = vsub.f32 1.0, %v1296
        %v1298 = vmul.f32 %v1295, %v1297
        %v1299 = vadd.f32 %v1295, %v1298
        %vm1300 = vweird.f32 %v1294
        %vm1301 = vweird.f32 %v1295
        %vm1302 = vmor %vm1300, %vm1301
        %v1303 = vsel %vm1302, %v1295, %v1299
        %v1304 = vand.u32 2147483647, %v1294
        %vm1305 = vcmp.eq.f32.partialorder %v1304, 8.507059e+37
        %v1306 = vand.u32 %v1294, 2147483648
        %v1307 = vor.u32 1.1754944e-38, %v1306
        %v1308 = vsel %vm1305, %v1307, %v1303
        %v1309 = vmul.f32 1.0, %v1308
        %v1310 = vxor.u32 %v1288, 2147483648
        %v1311 = vmul.f32 %v1310, 1.442695
        %v1312 = vpow.pop %v1311
        %v1313 = vadd.f32 %v1312, 1.0
        %v1314 = vrcp.pop %v1313
        %v1315 = vmul.f32 %v1313, %v1314
        %v1316 = vsub.f32 1.0, %v1315
        %v1317 = vmul.f32 %v1314, %v1316
        %v1318 = vadd.f32 %v1314, %v1317
        %vm1319 = vweird.f32 %v1313
        %vm1320 = vweird.f32 %v1314
        %vm1321 = vmor %vm1319, %vm1320
        %v1322 = vsel %vm1321, %v1314, %v1318
        %v1323 = vand.u32 2147483647, %v1313
        %vm1324 = vcmp.eq.f32.partialorder %v1323, 8.507059e+37
        %v1325 = vand.u32 %v1313, 2147483648
        %v1326 = vor.u32 1.1754944e-38, %v1325
        %v1327 = vsel %vm1324, %v1326, %v1322
        %v1328 = vmul.f32 1.0, %v1327
        %v1329 = vtanh.pop %v1289
        %v1330 = vxor.u32 %v1290, 2147483648
        %v1331 = vmul.f32 %v1330, 1.442695
        %v1332 = vpow.pop %v1331
        %v1333 = vadd.f32 %v1332, 1.0
        %v1334 = vrcp.pop %v1333
        %v1335 = vmul.f32 %v1333, %v1334
        %v1336 = vsub.f32 1.0, %v1335
        %v1337 = vmul.f32 %v1334, %v1336
        %v1338 = vadd.f32 %v1334, %v1337
        %vm1339 = vweird.f32 %v1333
        %vm1340 = vweird.f32 %v1334
        %vm1341 = vmor %vm1339, %vm1340
        %v1342 = vsel %vm1341, %v1334, %v1338
        %v1343 = vand.u32 2147483647, %v1333
        %vm1344 = vcmp.eq.f32.partialorder %v1343, 8.507059e+37
        %v1345 = vand.u32 %v1333, 2147483648
        %v1346 = vor.u32 1.1754944e-38, %v1345
        %v1347 = vsel %vm1344, %v1346, %v1342
        %v1348 = vmul.f32 1.0, %v1347
        %v1349 = vmul.f32 %v1328, %v1224
        %v1350 = vmul.f32 %v1309, %v1329
        %v1351 = vadd.f32 %v1349, %v1350
        %v1352 = vtanh.pop %v1351
        %v1353 = vmul.f32 %v1348, %v1352
        %s1354 = scalar_lea.vmem %s265, 24 [#allocation13]
        %1355 = vst [vmem:[%s1354] sm:$0xff] %v1353
        %s1356 = scalar_lea.vmem [#allocation4], 128
        %v1357 = vld [vmem:[%s1356] sm:$0xff]
        %v1358 = vld [vmem:[%s1356 + $0x8] sm:$0xff]
        %v1359 = vld [vmem:[%s1356 + $0x10] sm:$0xff]
        %v1360 = vld [vmem:[%s1356 + $0x18] sm:$0xff]
        %v1361 = vpack.c.bf16 %v1353, %v1353
        %1362 = vmatpush.bf16.msra.mxu0 %v819
        %1363 = vmatpush.bf16.msra.mxu0 %v815
        %1364 = vmatpush.bf16.msra.mxu0 %v811
        %1365 = vmatpush.bf16.msra.mxu0 %v807
        %1366 = vmatpush.bf16.msra.mxu0 %v803
        %1367 = vmatpush.bf16.msra.mxu0 %v799
        %1368 = vmatpush.bf16.msra.mxu0 %v795
        %1369 = vmatpush.bf16.msra.mxu0 %v791
        %1370 = vmatmul.bf16.gmra.mxu0 %v1361
        %v1371 = vpop.f32.mrf.mxu0
        %v1372 = vadd.f32 0.0, %v1371
        %v1373 = vpop.f32.mrf.mxu0
        %1374 = vdwg.mxu0
        %1375 = vmatpush.bf16.msra.mxu0 %v820
        %1376 = vmatpush.bf16.msra.mxu0 %v816
        %1377 = vmatpush.bf16.msra.mxu0 %v812
        %1378 = vmatpush.bf16.msra.mxu0 %v808
        %1379 = vmatpush.bf16.msra.mxu0 %v804
        %1380 = vmatpush.bf16.msra.mxu0 %v800
        %1381 = vmatpush.bf16.msra.mxu0 %v796
        %1382 = vmatpush.bf16.msra.mxu0 %v792
        %1383 = vmatmul.bf16.gmra.mxu0 %v1361
        %v1384 = vpop.f32.mrf.mxu0
        %v1385 = vadd.f32 0.0, %v1384
        %v1386 = vpop.f32.mrf.mxu0
        %1387 = vdwg.mxu0
        %1388 = vmatpush.bf16.msra.mxu0 %v821
        %1389 = vmatpush.bf16.msra.mxu0 %v817
        %1390 = vmatpush.bf16.msra.mxu0 %v813
        %1391 = vmatpush.bf16.msra.mxu0 %v809
        %1392 = vmatpush.bf16.msra.mxu0 %v805
        %1393 = vmatpush.bf16.msra.mxu0 %v801
        %1394 = vmatpush.bf16.msra.mxu0 %v797
        %1395 = vmatpush.bf16.msra.mxu0 %v793
        %1396 = vmatmul.bf16.gmra.mxu0 %v1361
        %v1397 = vpop.f32.mrf.mxu0
        %v1398 = vadd.f32 0.0, %v1397
        %v1399 = vpop.f32.mrf.mxu0
        %1400 = vdwg.mxu0
        %1401 = vmatpush.bf16.msra.mxu0 %v822
        %1402 = vmatpush.bf16.msra.mxu0 %v818
        %1403 = vmatpush.bf16.msra.mxu0 %v814
        %1404 = vmatpush.bf16.msra.mxu0 %v810
        %1405 = vmatpush.bf16.msra.mxu0 %v806
        %1406 = vmatpush.bf16.msra.mxu0 %v802
        %1407 = vmatpush.bf16.msra.mxu0 %v798
        %1408 = vmatpush.bf16.msra.mxu0 %v794
        %1409 = vmatmul.bf16.gmra.mxu0 %v1361
        %v1410 = vpop.f32.mrf.mxu0
        %v1411 = vadd.f32 0.0, %v1410
        %v1412 = vpop.f32.mrf.mxu0
        %1413 = vdwg.mxu0
        %v1414 = vadd.f32 %v1357, %v1372
        %v1415 = vadd.f32 %v1358, %v1385
        %v1416 = vadd.f32 %v1359, %v1398
        %v1417 = vadd.f32 %v1360, %v1411
        %v1418 = vxor.u32 %v1414, 2147483648
        %v1419 = vmul.f32 %v1418, 1.442695
        %v1420 = vpow.pop %v1419
        %v1421 = vadd.f32 %v1420, 1.0
        %v1422 = vrcp.pop %v1421
        %v1423 = vmul.f32 %v1421, %v1422
        %v1424 = vsub.f32 1.0, %v1423
        %v1425 = vmul.f32 %v1422, %v1424
        %v1426 = vadd.f32 %v1422, %v1425
        %vm1427 = vweird.f32 %v1421
        %vm1428 = vweird.f32 %v1422
        %vm1429 = vmor %vm1427, %vm1428
        %v1430 = vsel %vm1429, %v1422, %v1426
        %v1431 = vand.u32 2147483647, %v1421
        %vm1432 = vcmp.eq.f32.partialorder %v1431, 8.507059e+37
        %v1433 = vand.u32 %v1421, 2147483648
        %v1434 = vor.u32 1.1754944e-38, %v1433
        %v1435 = vsel %vm1432, %v1434, %v1430
        %v1436 = vmul.f32 1.0, %v1435
        %v1437 = vxor.u32 %v1415, 2147483648
        %v1438 = vmul.f32 %v1437, 1.442695
        %v1439 = vpow.pop %v1438
        %v1440 = vadd.f32 %v1439, 1.0
        %v1441 = vrcp.pop %v1440
        %v1442 = vmul.f32 %v1440, %v1441
        %v1443 = vsub.f32 1.0, %v1442
        %v1444 = vmul.f32 %v1441, %v1443
        %v1445 = vadd.f32 %v1441, %v1444
        %vm1446 = vweird.f32 %v1440
        %vm1447 = vweird.f32 %v1441
        %vm1448 = vmor %vm1446, %vm1447
        %v1449 = vsel %vm1448, %v1441, %v1445
        %v1450 = vand.u32 2147483647, %v1440
        %vm1451 = vcmp.eq.f32.partialorder %v1450, 8.507059e+37
        %v1452 = vand.u32 %v1440, 2147483648
        %v1453 = vor.u32 1.1754944e-38, %v1452
        %v1454 = vsel %vm1451, %v1453, %v1449
        %v1455 = vmul.f32 1.0, %v1454
        %v1456 = vtanh.pop %v1416
        %v1457 = vxor.u32 %v1417, 2147483648
        %v1458 = vmul.f32 %v1457, 1.442695
        %v1459 = vpow.pop %v1458
        %v1460 = vadd.f32 %v1459, 1.0
        %v1461 = vrcp.pop %v1460
        %v1462 = vmul.f32 %v1460, %v1461
        %v1463 = vsub.f32 1.0, %v1462
        %v1464 = vmul.f32 %v1461, %v1463
        %v1465 = vadd.f32 %v1461, %v1464
        %vm1466 = vweird.f32 %v1460
        %vm1467 = vweird.f32 %v1461
        %vm1468 = vmor %vm1466, %vm1467
        %v1469 = vsel %vm1468, %v1461, %v1465
        %v1470 = vand.u32 2147483647, %v1460
        %vm1471 = vcmp.eq.f32.partialorder %v1470, 8.507059e+37
        %v1472 = vand.u32 %v1460, 2147483648
        %v1473 = vor.u32 1.1754944e-38, %v1472
        %v1474 = vsel %vm1471, %v1473, %v1469
        %v1475 = vmul.f32 1.0, %v1474
        %v1476 = vmul.f32 %v1455, %v1351
        %v1477 = vmul.f32 %v1436, %v1456
        %v1478 = vadd.f32 %v1476, %v1477
        %v1479 = vtanh.pop %v1478
        %v1480 = vmul.f32 %v1475, %v1479
        %s1481 = scalar_lea.vmem %s265, 32 [#allocation13]
        %1482 = vst [vmem:[%s1481] sm:$0xff] %v1480
        %s1483 = scalar_lea.vmem [#allocation4], 160
        %v1484 = vld [vmem:[%s1483] sm:$0xff]
        %v1485 = vld [vmem:[%s1483 + $0x8] sm:$0xff]
        %v1486 = vld [vmem:[%s1483 + $0x10] sm:$0xff]
        %v1487 = vld [vmem:[%s1483 + $0x18] sm:$0xff]
        %v1488 = vpack.c.bf16 %v1480, %v1480
        %1489 = vmatpush.bf16.msra.mxu0 %v819
        %1490 = vmatpush.bf16.msra.mxu0 %v815
        %1491 = vmatpush.bf16.msra.mxu0 %v811
        %1492 = vmatpush.bf16.msra.mxu0 %v807
        %1493 = vmatpush.bf16.msra.mxu0 %v803
        %1494 = vmatpush.bf16.msra.mxu0 %v799
        %1495 = vmatpush.bf16.msra.mxu0 %v795
        %1496 = vmatpush.bf16.msra.mxu0 %v791
        %1497 = vmatmul.bf16.gmra.mxu0 %v1488
        %v1498 = vpop.f32.mrf.mxu0
        %v1499 = vadd.f32 0.0, %v1498
        %v1500 = vpop.f32.mrf.mxu0
        %1501 = vdwg.mxu0
        %1502 = vmatpush.bf16.msra.mxu0 %v820
        %1503 = vmatpush.bf16.msra.mxu0 %v816
        %1504 = vmatpush.bf16.msra.mxu0 %v812
        %1505 = vmatpush.bf16.msra.mxu0 %v808
        %1506 = vmatpush.bf16.msra.mxu0 %v804
        %1507 = vmatpush.bf16.msra.mxu0 %v800
        %1508 = vmatpush.bf16.msra.mxu0 %v796
        %1509 = vmatpush.bf16.msra.mxu0 %v792
        %1510 = vmatmul.bf16.gmra.mxu0 %v1488
        %v1511 = vpop.f32.mrf.mxu0
        %v1512 = vadd.f32 0.0, %v1511
        %v1513 = vpop.f32.mrf.mxu0
        %1514 = vdwg.mxu0
        %1515 = vmatpush.bf16.msra.mxu0 %v821
        %1516 = vmatpush.bf16.msra.mxu0 %v817
        %1517 = vmatpush.bf16.msra.mxu0 %v813
        %1518 = vmatpush.bf16.msra.mxu0 %v809
        %1519 = vmatpush.bf16.msra.mxu0 %v805
        %1520 = vmatpush.bf16.msra.mxu0 %v801
        %1521 = vmatpush.bf16.msra.mxu0 %v797
        %1522 = vmatpush.bf16.msra.mxu0 %v793
        %1523 = vmatmul.bf16.gmra.mxu0 %v1488
        %v1524 = vpop.f32.mrf.mxu0
        %v1525 = vadd.f32 0.0, %v1524
        %v1526 = vpop.f32.mrf.mxu0
        %1527 = vdwg.mxu0
        %1528 = vmatpush.bf16.msra.mxu0 %v822
        %1529 = vmatpush.bf16.msra.mxu0 %v818
        %1530 = vmatpush.bf16.msra.mxu0 %v814
        %1531 = vmatpush.bf16.msra.mxu0 %v810
        %1532 = vmatpush.bf16.msra.mxu0 %v806
        %1533 = vmatpush.bf16.msra.mxu0 %v802
        %1534 = vmatpush.bf16.msra.mxu0 %v798
        %1535 = vmatpush.bf16.msra.mxu0 %v794
        %1536 = vmatmul.bf16.gmra.mxu0 %v1488
        %v1537 = vpop.f32.mrf.mxu0
        %v1538 = vadd.f32 0.0, %v1537
        %v1539 = vpop.f32.mrf.mxu0
        %1540 = vdwg.mxu0
        %v1541 = vadd.f32 %v1484, %v1499
        %v1542 = vadd.f32 %v1485, %v1512
        %v1543 = vadd.f32 %v1486, %v1525
        %v1544 = vadd.f32 %v1487, %v1538
        %v1545 = vxor.u32 %v1541, 2147483648
        %v1546 = vmul.f32 %v1545, 1.442695
        %v1547 = vpow.pop %v1546
        %v1548 = vadd.f32 %v1547, 1.0
        %v1549 = vrcp.pop %v1548
        %v1550 = vmul.f32 %v1548, %v1549
        %v1551 = vsub.f32 1.0, %v1550
        %v1552 = vmul.f32 %v1549, %v1551
        %v1553 = vadd.f32 %v1549, %v1552
        %vm1554 = vweird.f32 %v1548
        %vm1555 = vweird.f32 %v1549
        %vm1556 = vmor %vm1554, %vm1555
        %v1557 = vsel %vm1556, %v1549, %v1553
        %v1558 = vand.u32 2147483647, %v1548
        %vm1559 = vcmp.eq.f32.partialorder %v1558, 8.507059e+37
        %v1560 = vand.u32 %v1548, 2147483648
        %v1561 = vor.u32 1.1754944e-38, %v1560
        %v1562 = vsel %vm1559, %v1561, %v1557
        %v1563 = vmul.f32 1.0, %v1562
        %v1564 = vxor.u32 %v1542, 2147483648
        %v1565 = vmul.f32 %v1564, 1.442695
        %v1566 = vpow.pop %v1565
        %v1567 = vadd.f32 %v1566, 1.0
        %v1568 = vrcp.pop %v1567
        %v1569 = vmul.f32 %v1567, %v1568
        %v1570 = vsub.f32 1.0, %v1569
        %v1571 = vmul.f32 %v1568, %v1570
        %v1572 = vadd.f32 %v1568, %v1571
        %vm1573 = vweird.f32 %v1567
        %vm1574 = vweird.f32 %v1568
        %vm1575 = vmor %vm1573, %vm1574
        %v1576 = vsel %vm1575, %v1568, %v1572
        %v1577 = vand.u32 2147483647, %v1567
        %vm1578 = vcmp.eq.f32.partialorder %v1577, 8.507059e+37
        %v1579 = vand.u32 %v1567, 2147483648
        %v1580 = vor.u32 1.1754944e-38, %v1579
        %v1581 = vsel %vm1578, %v1580, %v1576
        %v1582 = vmul.f32 1.0, %v1581
        %v1583 = vtanh.pop %v1543
        %v1584 = vxor.u32 %v1544, 2147483648
        %v1585 = vmul.f32 %v1584, 1.442695
        %v1586 = vpow.pop %v1585
        %v1587 = vadd.f32 %v1586, 1.0
        %v1588 = vrcp.pop %v1587
        %v1589 = vmul.f32 %v1587, %v1588
        %v1590 = vsub.f32 1.0, %v1589
        %v1591 = vmul.f32 %v1588, %v1590
        %v1592 = vadd.f32 %v1588, %v1591
        %vm1593 = vweird.f32 %v1587
        %vm1594 = vweird.f32 %v1588
        %vm1595 = vmor %vm1593, %vm1594
        %v1596 = vsel %vm1595, %v1588, %v1592
        %v1597 = vand.u32 2147483647, %v1587
        %vm1598 = vcmp.eq.f32.partialorder %v1597, 8.507059e+37
        %v1599 = vand.u32 %v1587, 2147483648
        %v1600 = vor.u32 1.1754944e-38, %v1599
        %v1601 = vsel %vm1598, %v1600, %v1596
        %v1602 = vmul.f32 1.0, %v1601
        %v1603 = vmul.f32 %v1582, %v1478
        %v1604 = vmul.f32 %v1563, %v1583
        %v1605 = vadd.f32 %v1603, %v1604
        %v1606 = vtanh.pop %v1605
        %v1607 = vmul.f32 %v1602, %v1606
        %s1608 = scalar_lea.vmem %s265, 40 [#allocation13]
        %1609 = vst [vmem:[%s1608] sm:$0xff] %v1607
        %s1610 = scalar_lea.vmem [#allocation4], 192
        %v1611 = vld [vmem:[%s1610] sm:$0xff]
        %v1612 = vld [vmem:[%s1610 + $0x8] sm:$0xff]
        %v1613 = vld [vmem:[%s1610 + $0x10] sm:$0xff]
        %v1614 = vld [vmem:[%s1610 + $0x18] sm:$0xff]
        %v1615 = vpack.c.bf16 %v1607, %v1607
        %1616 = vmatpush.bf16.msra.mxu0 %v819
        %1617 = vmatpush.bf16.msra.mxu0 %v815
        %1618 = vmatpush.bf16.msra.mxu0 %v811
        %1619 = vmatpush.bf16.msra.mxu0 %v807
        %1620 = vmatpush.bf16.msra.mxu0 %v803
        %1621 = vmatpush.bf16.msra.mxu0 %v799
        %1622 = vmatpush.bf16.msra.mxu0 %v795
        %1623 = vmatpush.bf16.msra.mxu0 %v791
        %1624 = vmatmul.bf16.gmra.mxu0 %v1615
        %v1625 = vpop.f32.mrf.mxu0
        %v1626 = vadd.f32 0.0, %v1625
        %v1627 = vpop.f32.mrf.mxu0
        %1628 = vdwg.mxu0
        %1629 = vmatpush.bf16.msra.mxu0 %v820
        %1630 = vmatpush.bf16.msra.mxu0 %v816
        %1631 = vmatpush.bf16.msra.mxu0 %v812
        %1632 = vmatpush.bf16.msra.mxu0 %v808
        %1633 = vmatpush.bf16.msra.mxu0 %v804
        %1634 = vmatpush.bf16.msra.mxu0 %v800
        %1635 = vmatpush.bf16.msra.mxu0 %v796
        %1636 = vmatpush.bf16.msra.mxu0 %v792
        %1637 = vmatmul.bf16.gmra.mxu0 %v1615
        %v1638 = vpop.f32.mrf.mxu0
        %v1639 = vadd.f32 0.0, %v1638
        %v1640 = vpop.f32.mrf.mxu0
        %1641 = vdwg.mxu0
        %1642 = vmatpush.bf16.msra.mxu0 %v821
        %1643 = vmatpush.bf16.msra.mxu0 %v817
        %1644 = vmatpush.bf16.msra.mxu0 %v813
        %1645 = vmatpush.bf16.msra.mxu0 %v809
        %1646 = vmatpush.bf16.msra.mxu0 %v805
        %1647 = vmatpush.bf16.msra.mxu0 %v801
        %1648 = vmatpush.bf16.msra.mxu0 %v797
        %1649 = vmatpush.bf16.msra.mxu0 %v793
        %1650 = vmatmul.bf16.gmra.mxu0 %v1615
        %v1651 = vpop.f32.mrf.mxu0
        %v1652 = vadd.f32 0.0, %v1651
        %v1653 = vpop.f32.mrf.mxu0
        %1654 = vdwg.mxu0
        %1655 = vmatpush.bf16.msra.mxu0 %v822
        %1656 = vmatpush.bf16.msra.mxu0 %v818
        %1657 = vmatpush.bf16.msra.mxu0 %v814
        %1658 = vmatpush.bf16.msra.mxu0 %v810
        %1659 = vmatpush.bf16.msra.mxu0 %v806
        %1660 = vmatpush.bf16.msra.mxu0 %v802
        %1661 = vmatpush.bf16.msra.mxu0 %v798
        %1662 = vmatpush.bf16.msra.mxu0 %v794
        %1663 = vmatmul.bf16.gmra.mxu0 %v1615
        %v1664 = vpop.f32.mrf.mxu0
        %v1665 = vadd.f32 0.0, %v1664
        %v1666 = vpop.f32.mrf.mxu0
        %1667 = vdwg.mxu0
        %v1668 = vadd.f32 %v1611, %v1626
        %v1669 = vadd.f32 %v1612, %v1639
        %v1670 = vadd.f32 %v1613, %v1652
        %v1671 = vadd.f32 %v1614, %v1665
        %v1672 = vxor.u32 %v1668, 2147483648
        %v1673 = vmul.f32 %v1672, 1.442695
        %v1674 = vpow.pop %v1673
        %v1675 = vadd.f32 %v1674, 1.0
        %v1676 = vrcp.pop %v1675
        %v1677 = vmul.f32 %v1675, %v1676
        %v1678 = vsub.f32 1.0, %v1677
        %v1679 = vmul.f32 %v1676, %v1678
        %v1680 = vadd.f32 %v1676, %v1679
        %vm1681 = vweird.f32 %v1675
        %vm1682 = vweird.f32 %v1676
        %vm1683 = vmor %vm1681, %vm1682
        %v1684 = vsel %vm1683, %v1676, %v1680
        %v1685 = vand.u32 2147483647, %v1675
        %vm1686 = vcmp.eq.f32.partialorder %v1685, 8.507059e+37
        %v1687 = vand.u32 %v1675, 2147483648
        %v1688 = vor.u32 1.1754944e-38, %v1687
        %v1689 = vsel %vm1686, %v1688, %v1684
        %v1690 = vmul.f32 1.0, %v1689
        %v1691 = vxor.u32 %v1669, 2147483648
        %v1692 = vmul.f32 %v1691, 1.442695
        %v1693 = vpow.pop %v1692
        %v1694 = vadd.f32 %v1693, 1.0
        %v1695 = vrcp.pop %v1694
        %v1696 = vmul.f32 %v1694, %v1695
        %v1697 = vsub.f32 1.0, %v1696
        %v1698 = vmul.f32 %v1695, %v1697
        %v1699 = vadd.f32 %v1695, %v1698
        %vm1700 = vweird.f32 %v1694
        %vm1701 = vweird.f32 %v1695
        %vm1702 = vmor %vm1700, %vm1701
        %v1703 = vsel %vm1702, %v1695, %v1699
        %v1704 = vand.u32 2147483647, %v1694
        %vm1705 = vcmp.eq.f32.partialorder %v1704, 8.507059e+37
        %v1706 = vand.u32 %v1694, 2147483648
        %v1707 = vor.u32 1.1754944e-38, %v1706
        %v1708 = vsel %vm1705, %v1707, %v1703
        %v1709 = vmul.f32 1.0, %v1708
        %v1710 = vtanh.pop %v1670
        %v1711 = vxor.u32 %v1671, 2147483648
        %v1712 = vmul.f32 %v1711, 1.442695
        %v1713 = vpow.pop %v1712
        %v1714 = vadd.f32 %v1713, 1.0
        %v1715 = vrcp.pop %v1714
        %v1716 = vmul.f32 %v1714, %v1715
        %v1717 = vsub.f32 1.0, %v1716
        %v1718 = vmul.f32 %v1715, %v1717
        %v1719 = vadd.f32 %v1715, %v1718
        %vm1720 = vweird.f32 %v1714
        %vm1721 = vweird.f32 %v1715
        %vm1722 = vmor %vm1720, %vm1721
        %v1723 = vsel %vm1722, %v1715, %v1719
        %v1724 = vand.u32 2147483647, %v1714
        %vm1725 = vcmp.eq.f32.partialorder %v1724, 8.507059e+37
        %v1726 = vand.u32 %v1714, 2147483648
        %v1727 = vor.u32 1.1754944e-38, %v1726
        %v1728 = vsel %vm1725, %v1727, %v1723
        %v1729 = vmul.f32 1.0, %v1728
        %v1730 = vmul.f32 %v1709, %v1605
        %v1731 = vmul.f32 %v1690, %v1710
        %v1732 = vadd.f32 %v1730, %v1731
        %v1733 = vtanh.pop %v1732
        %v1734 = vmul.f32 %v1729, %v1733
        %s1735 = scalar_lea.vmem %s265, 48 [#allocation13]
        %1736 = vst [vmem:[%s1735] sm:$0xff] %v1734
        %s1737 = scalar_lea.vmem [#allocation4], 224
        %v1738 = vld [vmem:[%s1737] sm:$0xff]
        %v1739 = vld [vmem:[%s1737 + $0x8] sm:$0xff]
        %v1740 = vld [vmem:[%s1737 + $0x10] sm:$0xff]
        %v1741 = vld [vmem:[%s1737 + $0x18] sm:$0xff]
        %v1742 = vpack.c.bf16 %v1734, %v1734
        %1743 = vmatpush.bf16.msra.mxu0 %v819
        %1744 = vmatpush.bf16.msra.mxu0 %v815
        %1745 = vmatpush.bf16.msra.mxu0 %v811
        %1746 = vmatpush.bf16.msra.mxu0 %v807
        %1747 = vmatpush.bf16.msra.mxu0 %v803
        %1748 = vmatpush.bf16.msra.mxu0 %v799
        %1749 = vmatpush.bf16.msra.mxu0 %v795
        %1750 = vmatpush.bf16.msra.mxu0 %v791
        %1751 = vmatmul.bf16.gmra.mxu0 %v1742
        %v1752 = vpop.f32.mrf.mxu0
        %v1753 = vadd.f32 0.0, %v1752
        %v1754 = vpop.f32.mrf.mxu0
        %1755 = vdwg.mxu0
        %1756 = vmatpush.bf16.msra.mxu0 %v820
        %1757 = vmatpush.bf16.msra.mxu0 %v816
        %1758 = vmatpush.bf16.msra.mxu0 %v812
        %1759 = vmatpush.bf16.msra.mxu0 %v808
        %1760 = vmatpush.bf16.msra.mxu0 %v804
        %1761 = vmatpush.bf16.msra.mxu0 %v800
        %1762 = vmatpush.bf16.msra.mxu0 %v796
        %1763 = vmatpush.bf16.msra.mxu0 %v792
        %1764 = vmatmul.bf16.gmra.mxu0 %v1742
        %v1765 = vpop.f32.mrf.mxu0
        %v1766 = vadd.f32 0.0, %v1765
        %v1767 = vpop.f32.mrf.mxu0
        %1768 = vdwg.mxu0
        %1769 = vmatpush.bf16.msra.mxu0 %v821
        %1770 = vmatpush.bf16.msra.mxu0 %v817
        %1771 = vmatpush.bf16.msra.mxu0 %v813
        %1772 = vmatpush.bf16.msra.mxu0 %v809
        %1773 = vmatpush.bf16.msra.mxu0 %v805
        %1774 = vmatpush.bf16.msra.mxu0 %v801
        %1775 = vmatpush.bf16.msra.mxu0 %v797
        %1776 = vmatpush.bf16.msra.mxu0 %v793
        %1777 = vmatmul.bf16.gmra.mxu0 %v1742
        %v1778 = vpop.f32.mrf.mxu0
        %v1779 = vadd.f32 0.0, %v1778
        %v1780 = vpop.f32.mrf.mxu0
        %1781 = vdwg.mxu0
        %1782 = vmatpush.bf16.msra.mxu0 %v822
        %1783 = vmatpush.bf16.msra.mxu0 %v818
        %1784 = vmatpush.bf16.msra.mxu0 %v814
        %1785 = vmatpush.bf16.msra.mxu0 %v810
        %1786 = vmatpush.bf16.msra.mxu0 %v806
        %1787 = vmatpush.bf16.msra.mxu0 %v802
        %1788 = vmatpush.bf16.msra.mxu0 %v798
        %1789 = vmatpush.bf16.msra.mxu0 %v794
        %1790 = vmatmul.bf16.gmra.mxu0 %v1742
        %v1791 = vpop.f32.mrf.mxu0
        %v1792 = vadd.f32 0.0, %v1791
        %v1793 = vpop.f32.mrf.mxu0
        %1794 = vdwg.mxu0
        %v1795 = vadd.f32 %v1738, %v1753
        %v1796 = vadd.f32 %v1739, %v1766
        %v1797 = vadd.f32 %v1740, %v1779
        %v1798 = vadd.f32 %v1741, %v1792
        %v1799 = vxor.u32 %v1795, 2147483648
        %v1800 = vmul.f32 %v1799, 1.442695
        %v1801 = vpow.pop %v1800
        %v1802 = vadd.f32 %v1801, 1.0
        %v1803 = vrcp.pop %v1802
        %v1804 = vmul.f32 %v1802, %v1803
        %v1805 = vsub.f32 1.0, %v1804
        %v1806 = vmul.f32 %v1803, %v1805
        %v1807 = vadd.f32 %v1803, %v1806
        %vm1808 = vweird.f32 %v1802
        %vm1809 = vweird.f32 %v1803
        %vm1810 = vmor %vm1808, %vm1809
        %v1811 = vsel %vm1810, %v1803, %v1807
        %v1812 = vand.u32 2147483647, %v1802
        %vm1813 = vcmp.eq.f32.partialorder %v1812, 8.507059e+37
        %v1814 = vand.u32 %v1802, 2147483648
        %v1815 = vor.u32 1.1754944e-38, %v1814
        %v1816 = vsel %vm1813, %v1815, %v1811
        %v1817 = vmul.f32 1.0, %v1816
        %v1818 = vxor.u32 %v1796, 2147483648
        %v1819 = vmul.f32 %v1818, 1.442695
        %v1820 = vpow.pop %v1819
        %v1821 = vadd.f32 %v1820, 1.0
        %v1822 = vrcp.pop %v1821
        %v1823 = vmul.f32 %v1821, %v1822
        %v1824 = vsub.f32 1.0, %v1823
        %v1825 = vmul.f32 %v1822, %v1824
        %v1826 = vadd.f32 %v1822, %v1825
        %vm1827 = vweird.f32 %v1821
        %vm1828 = vweird.f32 %v1822
        %vm1829 = vmor %vm1827, %vm1828
        %v1830 = vsel %vm1829, %v1822, %v1826
        %v1831 = vand.u32 2147483647, %v1821
        %vm1832 = vcmp.eq.f32.partialorder %v1831, 8.507059e+37
        %v1833 = vand.u32 %v1821, 2147483648
        %v1834 = vor.u32 1.1754944e-38, %v1833
        %v1835 = vsel %vm1832, %v1834, %v1830
        %v1836 = vmul.f32 1.0, %v1835
        %v1837 = vtanh.pop %v1797
        %v1838 = vxor.u32 %v1798, 2147483648
        %v1839 = vmul.f32 %v1838, 1.442695
        %v1840 = vpow.pop %v1839
        %v1841 = vadd.f32 %v1840, 1.0
        %v1842 = vrcp.pop %v1841
        %v1843 = vmul.f32 %v1841, %v1842
        %v1844 = vsub.f32 1.0, %v1843
        %v1845 = vmul.f32 %v1842, %v1844
        %v1846 = vadd.f32 %v1842, %v1845
        %vm1847 = vweird.f32 %v1841
        %vm1848 = vweird.f32 %v1842
        %vm1849 = vmor %vm1847, %vm1848
        %v1850 = vsel %vm1849, %v1842, %v1846
        %v1851 = vand.u32 2147483647, %v1841
        %vm1852 = vcmp.eq.f32.partialorder %v1851, 8.507059e+37
        %v1853 = vand.u32 %v1841, 2147483648
        %v1854 = vor.u32 1.1754944e-38, %v1853
        %v1855 = vsel %vm1852, %v1854, %v1850
        %v1856 = vmul.f32 1.0, %v1855
        %v1857 = vmul.f32 %v1836, %v1732
        %v1858 = vmul.f32 %v1817, %v1837
        %v1859 = vadd.f32 %v1857, %v1858
        %v1860 = vtanh.pop %v1859
        %v1861 = vmul.f32 %v1856, %v1860
        %s1862 = scalar_lea.vmem %s265, 56 [#allocation13]
        %1863 = vst [vmem:[%s1862] sm:$0xff] %v1861
        %1864 = vst [vmem:[#allocation2] sm:$0xff] %v1861
        %1865 = vst [vmem:[#allocation3] sm:$0xff] %v1859
        %s1866 = sand.u32 %s120, 1
        %s1867 = scalar_lea.sflag [#allocation7], %s1866
        %s1868 = sand.u32 %s120, 1
        %s1869 = smul.addr %s1868, 64
        %s1870 = scalar_lea.vmem [#allocation13], %s1869
        // Predicated region
        $region57: #{tpu_custom_call.1} parent=35 // pred_check
          %p1871 = pneg %p130
        $region58: #{tpu_custom_call.1} parent=35 // pred_check_branch
          %1873 = sbr.rel (%p1871) target = $region60
        $region59: #{tpu_custom_call.1} parent=35 // pred_region
          %s1874 = smul.u32 8, %s23
          %1876 = vsyncadd %s1867, 0
          %s1877 = smul.addr %s1874, 8
          %s1878 = scalar_lea.hbm %s4, %s1877
          %s1879 = sshll.u32 %s1870, 4
          %s1880 = int_to_ptr.vmem [resolvable:$true] %s1879
          %s1881 = sshll.u32 %s1878, 4
          %s1882 = int_to_ptr.hbm [resolvable:$true] %s1881
          %1887 = dma.vmem_to_hbm [thread:$0]  %s1880, 1024, %s1882, %s1867, 128, 128, 8
        $region60: #{tpu_custom_call.1} parent=35 // pred_fallthru
          _
      $region36: #{tpu_custom_call.1} parent=5 // pred_fallthru
        _
      %p1888 = scmp.le.s32.totalorder 2, %s18
      // Predicated region
      $region61: #{tpu_custom_call.1} parent=5 // pred_check
        %p1889 = pneg %p1888
      $region62: #{tpu_custom_call.1} parent=5 // pred_check_branch
        %1891 = sbr.rel (%p1889) target = $region64
      $region63: #{tpu_custom_call.1} parent=5 // pred_region
        %s1892 = ssub.s32 %s18, 2
        // Predicated region
        $region65: #{tpu_custom_call.1} parent=63 // pred_check
          %p1893 = pneg %p136
        $region66: #{tpu_custom_call.1} parent=63 // pred_check_branch
          %1895 = sbr.rel (%p1893) target = $region68
        $region67: #{tpu_custom_call.1} parent=63 // pred_region
          %s1896 = sand.u32 %s121, 1
          %s1897 = scalar_lea.sflag [#allocation7], %s1896
          %s1898 = sand.u32 %s121, 1
          %s1899 = smul.addr %s1898, 64
          %s1900 = scalar_lea.vmem [#allocation13], %s1899
          %1902 = dma.done %s1897, 1024
        $region68: #{tpu_custom_call.1} parent=63 // pred_fallthru
          _
      $region64: #{tpu_custom_call.1} parent=5 // pred_fallthru
        _
    $region6: #{tpu_custom_call.1} parent=1 // loop_footer
      %s22 = sadd.s32 1, %s18
    $region7: #{tpu_custom_call.1} parent=1 // loop_footer_branch
      %17 = sbr.rel target = $region3
    $region8: #{tpu_custom_call.1} parent=1 // loop_exit
      _
    %1903 = vsyncpa [#allocation6], 1
    %s1904 = scalar_lea.sflag [#allocation6], 1
    %1905 = vsyncpa %s1904, 1
    %1906 = vsyncpa [#allocation9], 1
    %1907 = vsyncpa [#allocation12], 1
    %1908 = vsyncpa [#allocation7], 1
    %s1909 = scalar_lea.sflag [#allocation7], 1
    %1910 = vsyncpa %s1909, 1

</llo_original>
